<compile_context>
chip_gen: v6e
topology: v6e:2x2x1
jax: 0.10.0
libtpu: 0.0.40
codegen_flags: <defaults>
</compile_context>

<pallas_src>
import functools

import jax
import jax.numpy as jnp
from jax import lax
from jax.experimental import pallas as pl
from jax.experimental.pallas import tpu as pltpu

KERNEL_SIZE = 7
PAD = KERNEL_SIZE // 2


def _tree_sum(xs):
    xs = list(xs)
    while len(xs) > 1:
        nxt = [xs[i] + xs[i + 1] for i in range(0, len(xs) - 1, 2)]
        if len(xs) % 2:
            nxt.append(xs[-1])
        xs = nxt
    return xs[0]


def _gate_from_maps(sum_map, max_map, w_ref, *, C, H, W):
    """7x7 2->1 'SAME' conv + sigmoid, computed in the flat (1, H*W) layout.

    sum_map / max_map: (1, H*W) f32 channel-sum / channel-max maps.
    w_ref: (2*K*K,) f32 SMEM ref, tap index = c*K*K + kh*K + kw (OIHW).
    Column shifts that would wrap across a row boundary are zeroed with a
    per-kw mask; row shifts out of [0, H) read genuine zeros from padding.
    """
    K = KERNEL_SIZE
    P = PAD
    HW = H * W
    avg_map = sum_map * jnp.float32(1.0 / C)                    # (1, HW)

    col = lax.broadcasted_iota(jnp.int32, (1, HW), 1) % W       # column of each flat pos
    zcol = jnp.zeros((1, P), jnp.float32)
    zrow = jnp.zeros((1, P * W), jnp.float32)

    accs = [jnp.zeros((1, HW), jnp.float32) for _ in range(K)]  # one chain per kh
    for kw in range(K):
        dw = kw - P
        valid = jnp.logical_and(col + dw >= 0, col + dw < W)

        def _col_shift(m):
            mp = jnp.concatenate([zcol, m, zcol], axis=1)       # (1, HW + 2P)
            s = lax.slice(mp, (0, P + dw), (1, P + dw + HW))    # (1, HW)
            return jnp.where(valid, s, 0.0)

        # column-shifted avg/max maps, zero-padded by P*W on both sides for row shifts
        ga = jnp.concatenate([zrow, _col_shift(avg_map), zrow], axis=1)
        gm = jnp.concatenate([zrow, _col_shift(max_map), zrow], axis=1)
        for kh in range(K):
            dh = kh - P
            off = (P + dh) * W
            ta = lax.slice(ga, (0, off), (1, off + HW))
            tm = lax.slice(gm, (0, off), (1, off + HW))
            accs[kh] = (accs[kh]
                        + w_ref[0 * K * K + kh * K + kw] * ta
                        + w_ref[1 * K * K + kh * K + kw] * tm)

    return jax.nn.sigmoid(_tree_sum(accs))                      # (1, HW)


def spatial_attention_kernel(x_ref, w_ref, o_ref, sum_ref, max_ref,
                             *, C, H, W, c_tile):
    # x_ref : (c_tile, H*W) channel tile of one image (input dtype)
    # w_ref : (2*K*K,) f32 conv taps in SMEM
    # o_ref : (C, H*W) full-C output block for this image (resident across c)
    # sum_ref / max_ref : (1, H*W) f32 running channel sum / max (VMEM scratch)
    HW = H * W
    c = pl.program_id(1)
    nc = pl.num_programs(1)

    x = x_ref[...]                                    # (c_tile, HW)
    xf = x.astype(jnp.float32)

    @pl.when(c == 0)
    def _init():
        sum_ref[...] = jnp.zeros((1, HW), jnp.float32)
        max_ref[...] = jnp.full((1, HW), -jnp.inf, jnp.float32)

    # Fused single-pass partial reductions over this channel tile.
    sum_ref[...] = sum_ref[...] + jnp.sum(xf, axis=0, keepdims=True)
    max_ref[...] = jnp.maximum(max_ref[...], jnp.max(xf, axis=0, keepdims=True))

    # Stage this channel tile into the full-C output block so it is still
    # resident in VMEM when the gate becomes available on the last tile.
    if c_tile == C:
        o_ref[...] = x
    else:
        start = pl.multiple_of(c * c_tile, c_tile)
        o_ref[pl.ds(start, c_tile), :] = x

    @pl.when(c == nc - 1)
    def _finalize():
        gate = _gate_from_maps(sum_ref[...], max_ref[...], w_ref, C=C, H=H, W=W)
        o_ref[...] = (o_ref[...].astype(jnp.float32) * gate).astype(o_ref.dtype)


def _pick_c_tile(C):
    """Channel-tile size: multiple-of-8 sublane tiles, ~4 pipeline steps/image."""
    if C <= 8 or C % 8 != 0:
        return C
    t = max(8, ((C // 4) // 8) * 8)
    while C % t != 0:
        t -= 8
    return t


def spatial_attention(x, conv_weight):
    """x: (B, C, H, W).  conv_weight: (1, 2, K, K) (OIHW, bias-free)."""
    B, C, H, W = x.shape
    HW = H * W
    c_tile = _pick_c_tile(C)
    nc = C // c_tile
    w_flat = conv_weight.reshape(-1).astype(jnp.float32)        # (2*K*K,)

    # Lane-dense layout: collapse (H, W) -> H*W (free, row-major).
    x_flat = x.reshape(B, C, HW)

    kernel = functools.partial(spatial_attention_kernel,
                               C=C, H=H, W=W, c_tile=c_tile)

    itemsize = jnp.dtype(x.dtype).itemsize
    cost = pl.CostEstimate(
        flops=int(B * HW * (3 * C + 4 * KERNEL_SIZE * KERNEL_SIZE)),
        transcendentals=int(B * HW),
        bytes_accessed=int(2 * B * C * HW * itemsize),
    )

    out_flat = pl.pallas_call(
        kernel,
        out_shape=jax.ShapeDtypeStruct((B, C, HW), x.dtype),
        grid_spec=pltpu.PrefetchScalarGridSpec(
            num_scalar_prefetch=0,
            grid=(B, nc),
            in_specs=[
                # one channel tile per grid step (batch dim squeezed)
                pl.BlockSpec((None, c_tile, HW), lambda b, c: (b, c, 0)),
                # flattened conv taps, whole array in SMEM
                pl.BlockSpec(memory_space=pltpu.MemorySpace.SMEM),
            ],
            # full-C output block, resident across the channel (reduction) axis
            out_specs=pl.BlockSpec((None, C, HW), lambda b, c: (b, 0, 0)),
            scratch_shapes=[
                pltpu.VMEM((1, HW), jnp.float32),   # running channel sum
                pltpu.VMEM((1, HW), jnp.float32),   # running channel max
            ],
        ),
        compiler_params=pltpu.CompilerParams(
            dimension_semantics=("parallel", "arbitrary"),
        ),
        cost_estimate=cost,
    )(x_flat, w_flat)
    return out_flat.reshape(B, C, H, W)


def spatial_attention_reference(x, conv_weight):
    """Pure-JAX reference (mirrors the PyTorch forward exactly)."""
    avg_out = jnp.mean(x, axis=1, keepdims=True)
    max_out = jnp.max(x, axis=1, keepdims=True)
    out = jnp.concatenate([avg_out, max_out], axis=1)           # (B, 2, H, W)
    conv = lax.conv_general_dilated(
        out, conv_weight,
        window_strides=(1, 1),
        padding=[(PAD, PAD), (PAD, PAD)],
        dimension_numbers=("NCHW", "OIHW", "NCHW"),
    )                                                            # (B, 1, H, W)
    return x * jax.nn.sigmoid(conv)


if __name__ == "__main__":
    key = jax.random.PRNGKey(0)
    kx, kw = jax.random.split(key)

    B, C, H, W = 2, 4, 16, 16
    x = jax.random.normal(kx, (B, C, H, W), dtype=jnp.float32)

    # Deterministic conv weight (shape of nn.Conv2d(2, 1, 7, bias=False)):
    # uniform(-bound, bound), bound = 1/sqrt(fan_in), fan_in = 2*7*7.
    fan_in = 2 * KERNEL_SIZE * KERNEL_SIZE
    bound = 1.0 / (fan_in ** 0.5)
    conv_weight = jax.random.uniform(
        kw, (1, 2, KERNEL_SIZE, KERNEL_SIZE),
        minval=-bound, maxval=bound, dtype=jnp.float32)

    out = jax.block_until_ready(spatial_attention(x, conv_weight))

    ref = spatial_attention_reference(x, conv_weight)
    assert out.shape == (B, C, H, W)
    assert out.dtype == x.dtype
    assert jnp.allclose(out, ref, rtol=1e-4, atol=1e-5), (
        f"max abs err = {jnp.max(jnp.abs(out - ref))}")

    print("KERNEL_OK")
</pallas_src>

<mosaic_0001>
module attributes {stable_mosaic.version = 11 : i64} {
  func.func @spatial_attention_kernel(%arg0: i32, %arg1: i32, %arg2: memref<1x4x256xf32, #tpu.memory_space<vmem>>, %arg3: memref<98xf32, #tpu.memory_space<smem>>, %arg4: memref<1x4x256xf32, #tpu.memory_space<vmem>>, %arg5: memref<1x256xf32, #tpu.memory_space<vmem>>, %arg6: memref<1x256xf32, #tpu.memory_space<vmem>>) attributes {dimension_semantics = [#tpu.dimension_semantics<parallel>, #tpu.dimension_semantics<arbitrary>], iteration_bounds = array<i64: 2, 1>, scalar_prefetch = 0 : i64, scratch_operands = 2 : i64, tpu.core_type = #tpu.core_type<tc>, window_params = [{transform_indices = @transform_0, window_bounds = array<i64: 1, 4, 256>}, {transform_indices = @transform_1, window_bounds = array<i64: 98>}, {transform_indices = @transform_2, window_bounds = array<i64: 1, 4, 256>}]} {
    %c0 = arith.constant 0 : index
    %c0_0 = arith.constant 0 : index
    %c0_1 = arith.constant 0 : index
    %0 = vector.load %arg2[%c0, %c0_0, %c0_1] : memref<1x4x256xf32, #tpu.memory_space<vmem>>, vector<1x4x256xf32>
    %1 = vector.shape_cast %0 : vector<1x4x256xf32> to vector<4x256xf32>
    %c0_i32 = arith.constant 0 : i32
    %2 = arith.cmpi eq, %arg1, %c0_i32 : i32
    %3 = arith.extui %2 : i1 to i32
    %c0_i32_2 = arith.constant 0 : i32
    %4 = arith.cmpi ne, %3, %c0_i32_2 : i32
    scf.if %4 {
      %cst_17 = arith.constant 0.000000e+00 : f32
      %21 = vector.broadcast %cst_17 : f32 to vector<1x256xf32>
      %c0_18 = arith.constant 0 : index
      %c0_19 = arith.constant 0 : index
      %22 = vector.load %arg5[%c0_18, %c0_19] : memref<1x256xf32, #tpu.memory_space<vmem>>, vector<1x256xf32>
      tpu.vector_store %arg5[%c0_18, %c0_19], %21 {strides = array<i32>} : memref<1x256xf32, #tpu.memory_space<vmem>>, vector<1x256xf32>,
      %cst_20 = arith.constant 0xFF800000 : f32
      %23 = vector.broadcast %cst_20 : f32 to vector<1x256xf32>
      %c0_21 = arith.constant 0 : index
      %c0_22 = arith.constant 0 : index
      %24 = vector.load %arg6[%c0_21, %c0_22] : memref<1x256xf32, #tpu.memory_space<vmem>>, vector<1x256xf32>
      tpu.vector_store %arg6[%c0_21, %c0_22], %23 {strides = array<i32>} : memref<1x256xf32, #tpu.memory_space<vmem>>, vector<1x256xf32>,
    } else {
    }
    %c0_3 = arith.constant 0 : index
    %c0_4 = arith.constant 0 : index
    %5 = vector.load %arg5[%c0_3, %c0_4] : memref<1x256xf32, #tpu.memory_space<vmem>>, vector<1x256xf32>
    %cst = arith.constant dense<0.000000e+00> : vector<256xf32>
    %6 = vector.multi_reduction <add>, %1, %cst [0] : vector<4x256xf32> to vector<256xf32>
    %7 = vector.shape_cast %6 : vector<256xf32> to vector<1x256xf32>
    %8 = arith.addf %5, %7 : vector<1x256xf32>
    %c0_5 = arith.constant 0 : index
    %c0_6 = arith.constant 0 : index
    %9 = vector.load %arg5[%c0_5, %c0_6] : memref<1x256xf32, #tpu.memory_space<vmem>>, vector<1x256xf32>
    tpu.vector_store %arg5[%c0_5, %c0_6], %8 {strides = array<i32>} : memref<1x256xf32, #tpu.memory_space<vmem>>, vector<1x256xf32>,
    %c0_7 = arith.constant 0 : index
    %c0_8 = arith.constant 0 : index
    %10 = vector.load %arg6[%c0_7, %c0_8] : memref<1x256xf32, #tpu.memory_space<vmem>>, vector<1x256xf32>
    %cst_9 = arith.constant dense<0xFF800000> : vector<256xf32>
    %11 = vector.multi_reduction <maximumf>, %1, %cst_9 [0] : vector<4x256xf32> to vector<256xf32>
    %12 = vector.shape_cast %11 : vector<256xf32> to vector<1x256xf32>
    %13 = arith.maximumf %10, %12 : vector<1x256xf32>
    %c0_10 = arith.constant 0 : index
    %c0_11 = arith.constant 0 : index
    %14 = vector.load %arg6[%c0_10, %c0_11] : memref<1x256xf32, #tpu.memory_space<vmem>>, vector<1x256xf32>
    tpu.vector_store %arg6[%c0_10, %c0_11], %13 {strides = array<i32>} : memref<1x256xf32, #tpu.memory_space<vmem>>, vector<1x256xf32>,
    %c0_12 = arith.constant 0 : index
    %c0_13 = arith.constant 0 : index
    %c0_14 = arith.constant 0 : index
    %15 = vector.load %arg4[%c0_12, %c0_13, %c0_14] : memref<1x4x256xf32, #tpu.memory_space<vmem>>, vector<1x4x256xf32>
    %16 = vector.shape_cast %15 : vector<1x4x256xf32> to vector<4x256xf32>
    %17 = vector.shape_cast %1 : vector<4x256xf32> to vector<1x4x256xf32>
    tpu.vector_store %arg4[%c0_12, %c0_13, %c0_14], %17 {strides = array<i32>} : memref<1x4x256xf32, #tpu.memory_space<vmem>>, vector<1x4x256xf32>,
    %c0_i32_15 = arith.constant 0 : i32
    %18 = arith.cmpi eq, %arg1, %c0_i32_15 : i32
    %19 = arith.extui %18 : i1 to i32
    %c0_i32_16 = arith.constant 0 : i32
    %20 = arith.cmpi ne, %19, %c0_i32_16 : i32
    scf.if %20 {
      %c0_17 = arith.constant 0 : index
      %c0_18 = arith.constant 0 : index
      %21 = vector.load %arg5[%c0_17, %c0_18] : memref<1x256xf32, #tpu.memory_space<vmem>>, vector<1x256xf32>
      %c0_19 = arith.constant 0 : index
      %c0_20 = arith.constant 0 : index
      %22 = vector.load %arg6[%c0_19, %c0_20] : memref<1x256xf32, #tpu.memory_space<vmem>>, vector<1x256xf32>
      %cst_21 = arith.constant 2.500000e-01 : f32
      %23 = vector.broadcast %cst_21 : f32 to vector<1x256xf32>
      %24 = arith.mulf %21, %23 : vector<1x256xf32>
      %25 = tpu.iota {dimensions = array<i32: 1>} : vector<1x256xi32>
      %c16_i32 = arith.constant 16 : i32
      %c0_i32_22 = arith.constant 0 : i32
      %26 = arith.cmpi eq, %c16_i32, %c0_i32_22 : i32
      %c1_i32 = arith.constant 1 : i32
      %27 = arith.select %26, %c1_i32, %c16_i32 : i32
      %28 = vector.broadcast %27 : i32 to vector<1x256xi32>
      %29 = arith.remsi %25, %28 : vector<1x256xi32>
      %c0_i32_23 = arith.constant 0 : i32
      %30 = vector.broadcast %c0_i32_23 : i32 to vector<1x256xi32>
      %31 = arith.cmpi ne, %29, %30 : vector<1x256xi32>
      %c0_i32_24 = arith.constant 0 : i32
      %32 = vector.broadcast %c0_i32_24 : i32 to vector<1x256xi32>
      %33 = arith.cmpi slt, %29, %32 : vector<1x256xi32>
      %c0_i32_25 = arith.constant 0 : i32
      %34 = arith.cmpi slt, %27, %c0_i32_25 : i32
      %35 = vector.broadcast %34 : i1 to vector<1x256xi1>
      %36 = vector.broadcast %35 : vector<1x256xi1> to vector<1x256xi1>
      %37 = arith.xori %33, %36 : vector<1x256xi1>
      %38 = arith.andi %37, %31 : vector<1x256xi1>
      %39 = vector.broadcast %27 : i32 to vector<1x256xi32>
      %40 = arith.addi %29, %39 : vector<1x256xi32>
      %41 = arith.select %38, %40, %29 : vector<1x256xi1>, vector<1x256xi32>
      %cst_26 = arith.constant 0.000000e+00 : f32
      %42 = vector.broadcast %cst_26 : f32 to vector<1x3xf32>
      %cst_27 = arith.constant 0.000000e+00 : f32
      %43 = vector.broadcast %cst_27 : f32 to vector<1x48xf32>
      %cst_28 = arith.constant 0.000000e+00 : f32
      %44 = vector.broadcast %cst_28 : f32 to vector<1x256xf32>
      %cst_29 = arith.constant 0.000000e+00 : f32
      %45 = vector.broadcast %cst_29 : f32 to vector<1x256xf32>
      %cst_30 = arith.constant 0.000000e+00 : f32
      %46 = vector.broadcast %cst_30 : f32 to vector<1x256xf32>
      %cst_31 = arith.constant 0.000000e+00 : f32
      %47 = vector.broadcast %cst_31 : f32 to vector<1x256xf32>
      %cst_32 = arith.constant 0.000000e+00 : f32
      %48 = vector.broadcast %cst_32 : f32 to vector<1x256xf32>
      %cst_33 = arith.constant 0.000000e+00 : f32
      %49 = vector.broadcast %cst_33 : f32 to vector<1x256xf32>
      %cst_34 = arith.constant 0.000000e+00 : f32
      %50 = vector.broadcast %cst_34 : f32 to vector<1x256xf32>
      %c-3_i32 = arith.constant -3 : i32
      %51 = vector.broadcast %c-3_i32 : i32 to vector<1x256xi32>
      %52 = arith.addi %41, %51 : vector<1x256xi32>
      %c0_i32_35 = arith.constant 0 : i32
      %53 = vector.broadcast %c0_i32_35 : i32 to vector<1x256xi32>
      %54 = arith.cmpi sge, %52, %53 : vector<1x256xi32>
      %c-3_i32_36 = arith.constant -3 : i32
      %55 = vector.broadcast %c-3_i32_36 : i32 to vector<1x256xi32>
      %56 = arith.addi %41, %55 : vector<1x256xi32>
      %c16_i32_37 = arith.constant 16 : i32
      %57 = vector.broadcast %c16_i32_37 : i32 to vector<1x256xi32>
      %58 = arith.cmpi slt, %56, %57 : vector<1x256xi32>
      %59 = arith.andi %54, %58 : vector<1x256xi1>
      %60 = tpu.concatenate %42, %24, %42 in 1 : vector<1x3xf32>, vector<1x256xf32>, vector<1x3xf32> -> vector<1x262xf32>
      %61 = vector.extract_strided_slice %60 {offsets = [0, 0], sizes = [1, 256], strides = [1, 1]} : vector<1x262xf32> to vector<1x256xf32>
      %cst_38 = arith.constant 0.000000e+00 : f32
      %62 = vector.broadcast %cst_38 : f32 to vector<1x256xf32>
      %63 = arith.select %59, %61, %62 : vector<1x256xi1>, vector<1x256xf32>
      %64 = tpu.concatenate %43, %63, %43 in 1 : vector<1x48xf32>, vector<1x256xf32>, vector<1x48xf32> -> vector<1x352xf32>
      %65 = tpu.concatenate %42, %22, %42 in 1 : vector<1x3xf32>, vector<1x256xf32>, vector<1x3xf32> -> vector<1x262xf32>
      %66 = vector.extract_strided_slice %65 {offsets = [0, 0], sizes = [1, 256], strides = [1, 1]} : vector<1x262xf32> to vector<1x256xf32>
      %cst_39 = arith.constant 0.000000e+00 : f32
      %67 = vector.broadcast %cst_39 : f32 to vector<1x256xf32>
      %68 = arith.select %59, %66, %67 : vector<1x256xi1>, vector<1x256xf32>
      %69 = tpu.concatenate %43, %68, %43 in 1 : vector<1x48xf32>, vector<1x256xf32>, vector<1x48xf32> -> vector<1x352xf32>
      %70 = vector.extract_strided_slice %64 {offsets = [0, 0], sizes = [1, 256], strides = [1, 1]} : vector<1x352xf32> to vector<1x256xf32>
      %71 = vector.extract_strided_slice %69 {offsets = [0, 0], sizes = [1, 256], strides = [1, 1]} : vector<1x352xf32> to vector<1x256xf32>
      %c0_40 = arith.constant 0 : index
      %72 = memref.load %arg3[%c0_40] : memref<98xf32, #tpu.memory_space<smem>>
      %73 = vector.broadcast %72 : f32 to vector<1x256xf32>
      %74 = arith.mulf %73, %70 : vector<1x256xf32>
      %75 = arith.addf %44, %74 : vector<1x256xf32>
      %c49 = arith.constant 49 : index
      %76 = memref.load %arg3[%c49] : memref<98xf32, #tpu.memory_space<smem>>
      %77 = vector.broadcast %76 : f32 to vector<1x256xf32>
      %78 = arith.mulf %77, %71 : vector<1x256xf32>
      %79 = arith.addf %75, %78 : vector<1x256xf32>
      %80 = vector.extract_strided_slice %64 {offsets = [0, 16], sizes = [1, 256], strides = [1, 1]} : vector<1x352xf32> to vector<1x256xf32>
      %81 = vector.extract_strided_slice %69 {offsets = [0, 16], sizes = [1, 256], strides = [1, 1]} : vector<1x352xf32> to vector<1x256xf32>
      %c7 = arith.constant 7 : index
      %82 = memref.load %arg3[%c7] : memref<98xf32, #tpu.memory_space<smem>>
      %83 = vector.broadcast %82 : f32 to vector<1x256xf32>
      %84 = arith.mulf %83, %80 : vector<1x256xf32>
      %85 = arith.addf %45, %84 : vector<1x256xf32>
      %c56 = arith.constant 56 : index
      %86 = memref.load %arg3[%c56] : memref<98xf32, #tpu.memory_space<smem>>
      %87 = vector.broadcast %86 : f32 to vector<1x256xf32>
      %88 = arith.mulf %87, %81 : vector<1x256xf32>
      %89 = arith.addf %85, %88 : vector<1x256xf32>
      %90 = vector.extract_strided_slice %64 {offsets = [0, 32], sizes = [1, 256], strides = [1, 1]} : vector<1x352xf32> to vector<1x256xf32>
      %91 = vector.extract_strided_slice %69 {offsets = [0, 32], sizes = [1, 256], strides = [1, 1]} : vector<1x352xf32> to vector<1x256xf32>
      %c14 = arith.constant 14 : index
      %92 = memref.load %arg3[%c14] : memref<98xf32, #tpu.memory_space<smem>>
      %93 = vector.broadcast %92 : f32 to vector<1x256xf32>
      %94 = arith.mulf %93, %90 : vector<1x256xf32>
      %95 = arith.addf %46, %94 : vector<1x256xf32>
      %c63 = arith.constant 63 : index
      %96 = memref.load %arg3[%c63] : memref<98xf32, #tpu.memory_space<smem>>
      %97 = vector.broadcast %96 : f32 to vector<1x256xf32>
      %98 = arith.mulf %97, %91 : vector<1x256xf32>
      %99 = arith.addf %95, %98 : vector<1x256xf32>
      %100 = vector.extract_strided_slice %64 {offsets = [0, 48], sizes = [1, 256], strides = [1, 1]} : vector<1x352xf32> to vector<1x256xf32>
      %101 = vector.extract_strided_slice %69 {offsets = [0, 48], sizes = [1, 256], strides = [1, 1]} : vector<1x352xf32> to vector<1x256xf32>
      %c21 = arith.constant 21 : index
      %102 = memref.load %arg3[%c21] : memref<98xf32, #tpu.memory_space<smem>>
      %103 = vector.broadcast %102 : f32 to vector<1x256xf32>
      %104 = arith.mulf %103, %100 : vector<1x256xf32>
      %105 = arith.addf %47, %104 : vector<1x256xf32>
      %c70 = arith.constant 70 : index
      %106 = memref.load %arg3[%c70] : memref<98xf32, #tpu.memory_space<smem>>
      %107 = vector.broadcast %106 : f32 to vector<1x256xf32>
      %108 = arith.mulf %107, %101 : vector<1x256xf32>
      %109 = arith.addf %105, %108 : vector<1x256xf32>
      %110 = vector.extract_strided_slice %64 {offsets = [0, 64], sizes = [1, 256], strides = [1, 1]} : vector<1x352xf32> to vector<1x256xf32>
      %111 = vector.extract_strided_slice %69 {offsets = [0, 64], sizes = [1, 256], strides = [1, 1]} : vector<1x352xf32> to vector<1x256xf32>
      %c28 = arith.constant 28 : index
      %112 = memref.load %arg3[%c28] : memref<98xf32, #tpu.memory_space<smem>>
      %113 = vector.broadcast %112 : f32 to vector<1x256xf32>
      %114 = arith.mulf %113, %110 : vector<1x256xf32>
      %115 = arith.addf %48, %114 : vector<1x256xf32>
      %c77 = arith.constant 77 : index
      %116 = memref.load %arg3[%c77] : memref<98xf32, #tpu.memory_space<smem>>
      %117 = vector.broadcast %116 : f32 to vector<1x256xf32>
      %118 = arith.mulf %117, %111 : vector<1x256xf32>
      %119 = arith.addf %115, %118 : vector<1x256xf32>
      %120 = vector.extract_strided_slice %64 {offsets = [0, 80], sizes = [1, 256], strides = [1, 1]} : vector<1x352xf32> to vector<1x256xf32>
      %121 = vector.extract_strided_slice %69 {offsets = [0, 80], sizes = [1, 256], strides = [1, 1]} : vector<1x352xf32> to vector<1x256xf32>
      %c35 = arith.constant 35 : index
      %122 = memref.load %arg3[%c35] : memref<98xf32, #tpu.memory_space<smem>>
      %123 = vector.broadcast %122 : f32 to vector<1x256xf32>
      %124 = arith.mulf %123, %120 : vector<1x256xf32>
      %125 = arith.addf %49, %124 : vector<1x256xf32>
      %c84 = arith.constant 84 : index
      %126 = memref.load %arg3[%c84] : memref<98xf32, #tpu.memory_space<smem>>
      %127 = vector.broadcast %126 : f32 to vector<1x256xf32>
      %128 = arith.mulf %127, %121 : vector<1x256xf32>
      %129 = arith.addf %125, %128 : vector<1x256xf32>
      %130 = vector.extract_strided_slice %64 {offsets = [0, 96], sizes = [1, 256], strides = [1, 1]} : vector<1x352xf32> to vector<1x256xf32>
      %131 = vector.extract_strided_slice %69 {offsets = [0, 96], sizes = [1, 256], strides = [1, 1]} : vector<1x352xf32> to vector<1x256xf32>
      %c42 = arith.constant 42 : index
      %132 = memref.load %arg3[%c42] : memref<98xf32, #tpu.memory_space<smem>>
      %133 = vector.broadcast %132 : f32 to vector<1x256xf32>
      %134 = arith.mulf %133, %130 : vector<1x256xf32>
      %135 = arith.addf %50, %134 : vector<1x256xf32>
      %c91 = arith.constant 91 : index
      %136 = memref.load %arg3[%c91] : memref<98xf32, #tpu.memory_space<smem>>
      %137 = vector.broadcast %136 : f32 to vector<1x256xf32>
      %138 = arith.mulf %137, %131 : vector<1x256xf32>
      %139 = arith.addf %135, %138 : vector<1x256xf32>
      %c-2_i32 = arith.constant -2 : i32
      %140 = vector.broadcast %c-2_i32 : i32 to vector<1x256xi32>
      %141 = arith.addi %41, %140 : vector<1x256xi32>
      %c0_i32_41 = arith.constant 0 : i32
      %142 = vector.broadcast %c0_i32_41 : i32 to vector<1x256xi32>
      %143 = arith.cmpi sge, %141, %142 : vector<1x256xi32>
      %c-2_i32_42 = arith.constant -2 : i32
      %144 = vector.broadcast %c-2_i32_42 : i32 to vector<1x256xi32>
      %145 = arith.addi %41, %144 : vector<1x256xi32>
      %c16_i32_43 = arith.constant 16 : i32
      %146 = vector.broadcast %c16_i32_43 : i32 to vector<1x256xi32>
      %147 = arith.cmpi slt, %145, %146 : vector<1x256xi32>
      %148 = arith.andi %143, %147 : vector<1x256xi1>
      %149 = tpu.concatenate %42, %24, %42 in 1 : vector<1x3xf32>, vector<1x256xf32>, vector<1x3xf32> -> vector<1x262xf32>
      %150 = vector.extract_strided_slice %149 {offsets = [0, 1], sizes = [1, 256], strides = [1, 1]} : vector<1x262xf32> to vector<1x256xf32>
      %cst_44 = arith.constant 0.000000e+00 : f32
      %151 = vector.broadcast %cst_44 : f32 to vector<1x256xf32>
      %152 = arith.select %148, %150, %151 : vector<1x256xi1>, vector<1x256xf32>
      %153 = tpu.concatenate %43, %152, %43 in 1 : vector<1x48xf32>, vector<1x256xf32>, vector<1x48xf32> -> vector<1x352xf32>
      %154 = tpu.concatenate %42, %22, %42 in 1 : vector<1x3xf32>, vector<1x256xf32>, vector<1x3xf32> -> vector<1x262xf32>
      %155 = vector.extract_strided_slice %154 {offsets = [0, 1], sizes = [1, 256], strides = [1, 1]} : vector<1x262xf32> to vector<1x256xf32>
      %cst_45 = arith.constant 0.000000e+00 : f32
      %156 = vector.broadcast %cst_45 : f32 to vector<1x256xf32>
      %157 = arith.select %148, %155, %156 : vector<1x256xi1>, vector<1x256xf32>
      %158 = tpu.concatenate %43, %157, %43 in 1 : vector<1x48xf32>, vector<1x256xf32>, vector<1x48xf32> -> vector<1x352xf32>
      %159 = vector.extract_strided_slice %153 {offsets = [0, 0], sizes = [1, 256], strides = [1, 1]} : vector<1x352xf32> to vector<1x256xf32>
      %160 = vector.extract_strided_slice %158 {offsets = [0, 0], sizes = [1, 256], strides = [1, 1]} : vector<1x352xf32> to vector<1x256xf32>
      %c1 = arith.constant 1 : index
      %161 = memref.load %arg3[%c1] : memref<98xf32, #tpu.memory_space<smem>>
      %162 = vector.broadcast %161 : f32 to vector<1x256xf32>
      %163 = arith.mulf %162, %159 : vector<1x256xf32>
      %164 = arith.addf %79, %163 : vector<1x256xf32>
      %c50 = arith.constant 50 : index
      %165 = memref.load %arg3[%c50] : memref<98xf32, #tpu.memory_space<smem>>
      %166 = vector.broadcast %165 : f32 to vector<1x256xf32>
      %167 = arith.mulf %166, %160 : vector<1x256xf32>
      %168 = arith.addf %164, %167 : vector<1x256xf32>
      %169 = vector.extract_strided_slice %153 {offsets = [0, 16], sizes = [1, 256], strides = [1, 1]} : vector<1x352xf32> to vector<1x256xf32>
      %170 = vector.extract_strided_slice %158 {offsets = [0, 16], sizes = [1, 256], strides = [1, 1]} : vector<1x352xf32> to vector<1x256xf32>
      %c8 = arith.constant 8 : index
      %171 = memref.load %arg3[%c8] : memref<98xf32, #tpu.memory_space<smem>>
      %172 = vector.broadcast %171 : f32 to vector<1x256xf32>
      %173 = arith.mulf %172, %169 : vector<1x256xf32>
      %174 = arith.addf %89, %173 : vector<1x256xf32>
      %c57 = arith.constant 57 : index
      %175 = memref.load %arg3[%c57] : memref<98xf32, #tpu.memory_space<smem>>
      %176 = vector.broadcast %175 : f32 to vector<1x256xf32>
      %177 = arith.mulf %176, %170 : vector<1x256xf32>
      %178 = arith.addf %174, %177 : vector<1x256xf32>
      %179 = vector.extract_strided_slice %153 {offsets = [0, 32], sizes = [1, 256], strides = [1, 1]} : vector<1x352xf32> to vector<1x256xf32>
      %180 = vector.extract_strided_slice %158 {offsets = [0, 32], sizes = [1, 256], strides = [1, 1]} : vector<1x352xf32> to vector<1x256xf32>
      %c15 = arith.constant 15 : index
      %181 = memref.load %arg3[%c15] : memref<98xf32, #tpu.memory_space<smem>>
      %182 = vector.broadcast %181 : f32 to vector<1x256xf32>
      %183 = arith.mulf %182, %179 : vector<1x256xf32>
      %184 = arith.addf %99, %183 : vector<1x256xf32>
      %c64 = arith.constant 64 : index
      %185 = memref.load %arg3[%c64] : memref<98xf32, #tpu.memory_space<smem>>
      %186 = vector.broadcast %185 : f32 to vector<1x256xf32>
      %187 = arith.mulf %186, %180 : vector<1x256xf32>
      %188 = arith.addf %184, %187 : vector<1x256xf32>
      %189 = vector.extract_strided_slice %153 {offsets = [0, 48], sizes = [1, 256], strides = [1, 1]} : vector<1x352xf32> to vector<1x256xf32>
      %190 = vector.extract_strided_slice %158 {offsets = [0, 48], sizes = [1, 256], strides = [1, 1]} : vector<1x352xf32> to vector<1x256xf32>
      %c22 = arith.constant 22 : index
      %191 = memref.load %arg3[%c22] : memref<98xf32, #tpu.memory_space<smem>>
      %192 = vector.broadcast %191 : f32 to vector<1x256xf32>
      %193 = arith.mulf %192, %189 : vector<1x256xf32>
      %194 = arith.addf %109, %193 : vector<1x256xf32>
      %c71 = arith.constant 71 : index
      %195 = memref.load %arg3[%c71] : memref<98xf32, #tpu.memory_space<smem>>
      %196 = vector.broadcast %195 : f32 to vector<1x256xf32>
      %197 = arith.mulf %196, %190 : vector<1x256xf32>
      %198 = arith.addf %194, %197 : vector<1x256xf32>
      %199 = vector.extract_strided_slice %153 {offsets = [0, 64], sizes = [1, 256], strides = [1, 1]} : vector<1x352xf32> to vector<1x256xf32>
      %200 = vector.extract_strided_slice %158 {offsets = [0, 64], sizes = [1, 256], strides = [1, 1]} : vector<1x352xf32> to vector<1x256xf32>
      %c29 = arith.constant 29 : index
      %201 = memref.load %arg3[%c29] : memref<98xf32, #tpu.memory_space<smem>>
      %202 = vector.broadcast %201 : f32 to vector<1x256xf32>
      %203 = arith.mulf %202, %199 : vector<1x256xf32>
      %204 = arith.addf %119, %203 : vector<1x256xf32>
      %c78 = arith.constant 78 : index
      %205 = memref.load %arg3[%c78] : memref<98xf32, #tpu.memory_space<smem>>
      %206 = vector.broadcast %205 : f32 to vector<1x256xf32>
      %207 = arith.mulf %206, %200 : vector<1x256xf32>
      %208 = arith.addf %204, %207 : vector<1x256xf32>
      %209 = vector.extract_strided_slice %153 {offsets = [0, 80], sizes = [1, 256], strides = [1, 1]} : vector<1x352xf32> to vector<1x256xf32>
      %210 = vector.extract_strided_slice %158 {offsets = [0, 80], sizes = [1, 256], strides = [1, 1]} : vector<1x352xf32> to vector<1x256xf32>
      %c36 = arith.constant 36 : index
      %211 = memref.load %arg3[%c36] : memref<98xf32, #tpu.memory_space<smem>>
      %212 = vector.broadcast %211 : f32 to vector<1x256xf32>
      %213 = arith.mulf %212, %209 : vector<1x256xf32>
      %214 = arith.addf %129, %213 : vector<1x256xf32>
      %c85 = arith.constant 85 : index
      %215 = memref.load %arg3[%c85] : memref<98xf32, #tpu.memory_space<smem>>
      %216 = vector.broadcast %215 : f32 to vector<1x256xf32>
      %217 = arith.mulf %216, %210 : vector<1x256xf32>
      %218 = arith.addf %214, %217 : vector<1x256xf32>
      %219 = vector.extract_strided_slice %153 {offsets = [0, 96], sizes = [1, 256], strides = [1, 1]} : vector<1x352xf32> to vector<1x256xf32>
      %220 = vector.extract_strided_slice %158 {offsets = [0, 96], sizes = [1, 256], strides = [1, 1]} : vector<1x352xf32> to vector<1x256xf32>
      %c43 = arith.constant 43 : index
      %221 = memref.load %arg3[%c43] : memref<98xf32, #tpu.memory_space<smem>>
      %222 = vector.broadcast %221 : f32 to vector<1x256xf32>
      %223 = arith.mulf %222, %219 : vector<1x256xf32>
      %224 = arith.addf %139, %223 : vector<1x256xf32>
      %c92 = arith.constant 92 : index
      %225 = memref.load %arg3[%c92] : memref<98xf32, #tpu.memory_space<smem>>
      %226 = vector.broadcast %225 : f32 to vector<1x256xf32>
      %227 = arith.mulf %226, %220 : vector<1x256xf32>
      %228 = arith.addf %224, %227 : vector<1x256xf32>
      %c-1_i32 = arith.constant -1 : i32
      %229 = vector.broadcast %c-1_i32 : i32 to vector<1x256xi32>
      %230 = arith.addi %41, %229 : vector<1x256xi32>
      %c0_i32_46 = arith.constant 0 : i32
      %231 = vector.broadcast %c0_i32_46 : i32 to vector<1x256xi32>
      %232 = arith.cmpi sge, %230, %231 : vector<1x256xi32>
      %c-1_i32_47 = arith.constant -1 : i32
      %233 = vector.broadcast %c-1_i32_47 : i32 to vector<1x256xi32>
      %234 = arith.addi %41, %233 : vector<1x256xi32>
      %c16_i32_48 = arith.constant 16 : i32
      %235 = vector.broadcast %c16_i32_48 : i32 to vector<1x256xi32>
      %236 = arith.cmpi slt, %234, %235 : vector<1x256xi32>
      %237 = arith.andi %232, %236 : vector<1x256xi1>
      %238 = tpu.concatenate %42, %24, %42 in 1 : vector<1x3xf32>, vector<1x256xf32>, vector<1x3xf32> -> vector<1x262xf32>
      %239 = vector.extract_strided_slice %238 {offsets = [0, 2], sizes = [1, 256], strides = [1, 1]} : vector<1x262xf32> to vector<1x256xf32>
      %cst_49 = arith.constant 0.000000e+00 : f32
      %240 = vector.broadcast %cst_49 : f32 to vector<1x256xf32>
      %241 = arith.select %237, %239, %240 : vector<1x256xi1>, vector<1x256xf32>
      %242 = tpu.concatenate %43, %241, %43 in 1 : vector<1x48xf32>, vector<1x256xf32>, vector<1x48xf32> -> vector<1x352xf32>
      %243 = tpu.concatenate %42, %22, %42 in 1 : vector<1x3xf32>, vector<1x256xf32>, vector<1x3xf32> -> vector<1x262xf32>
      %244 = vector.extract_strided_slice %243 {offsets = [0, 2], sizes = [1, 256], strides = [1, 1]} : vector<1x262xf32> to vector<1x256xf32>
      %cst_50 = arith.constant 0.000000e+00 : f32
      %245 = vector.broadcast %cst_50 : f32 to vector<1x256xf32>
      %246 = arith.select %237, %244, %245 : vector<1x256xi1>, vector<1x256xf32>
      %247 = tpu.concatenate %43, %246, %43 in 1 : vector<1x48xf32>, vector<1x256xf32>, vector<1x48xf32> -> vector<1x352xf32>
      %248 = vector.extract_strided_slice %242 {offsets = [0, 0], sizes = [1, 256], strides = [1, 1]} : vector<1x352xf32> to vector<1x256xf32>
      %249 = vector.extract_strided_slice %247 {offsets = [0, 0], sizes = [1, 256], strides = [1, 1]} : vector<1x352xf32> to vector<1x256xf32>
      %c2 = arith.constant 2 : index
      %250 = memref.load %arg3[%c2] : memref<98xf32, #tpu.memory_space<smem>>
      %251 = vector.broadcast %250 : f32 to vector<1x256xf32>
      %252 = arith.mulf %251, %248 : vector<1x256xf32>
      %253 = arith.addf %168, %252 : vector<1x256xf32>
      %c51 = arith.constant 51 : index
      %254 = memref.load %arg3[%c51] : memref<98xf32, #tpu.memory_space<smem>>
      %255 = vector.broadcast %254 : f32 to vector<1x256xf32>
      %256 = arith.mulf %255, %249 : vector<1x256xf32>
      %257 = arith.addf %253, %256 : vector<1x256xf32>
      %258 = vector.extract_strided_slice %242 {offsets = [0, 16], sizes = [1, 256], strides = [1, 1]} : vector<1x352xf32> to vector<1x256xf32>
      %259 = vector.extract_strided_slice %247 {offsets = [0, 16], sizes = [1, 256], strides = [1, 1]} : vector<1x352xf32> to vector<1x256xf32>
      %c9 = arith.constant 9 : index
      %260 = memref.load %arg3[%c9] : memref<98xf32, #tpu.memory_space<smem>>
      %261 = vector.broadcast %260 : f32 to vector<1x256xf32>
      %262 = arith.mulf %261, %258 : vector<1x256xf32>
      %263 = arith.addf %178, %262 : vector<1x256xf32>
      %c58 = arith.constant 58 : index
      %264 = memref.load %arg3[%c58] : memref<98xf32, #tpu.memory_space<smem>>
      %265 = vector.broadcast %264 : f32 to vector<1x256xf32>
      %266 = arith.mulf %265, %259 : vector<1x256xf32>
      %267 = arith.addf %263, %266 : vector<1x256xf32>
      %268 = vector.extract_strided_slice %242 {offsets = [0, 32], sizes = [1, 256], strides = [1, 1]} : vector<1x352xf32> to vector<1x256xf32>
      %269 = vector.extract_strided_slice %247 {offsets = [0, 32], sizes = [1, 256], strides = [1, 1]} : vector<1x352xf32> to vector<1x256xf32>
      %c16 = arith.constant 16 : index
      %270 = memref.load %arg3[%c16] : memref<98xf32, #tpu.memory_space<smem>>
      %271 = vector.broadcast %270 : f32 to vector<1x256xf32>
      %272 = arith.mulf %271, %268 : vector<1x256xf32>
      %273 = arith.addf %188, %272 : vector<1x256xf32>
      %c65 = arith.constant 65 : index
      %274 = memref.load %arg3[%c65] : memref<98xf32, #tpu.memory_space<smem>>
      %275 = vector.broadcast %274 : f32 to vector<1x256xf32>
      %276 = arith.mulf %275, %269 : vector<1x256xf32>
      %277 = arith.addf %273, %276 : vector<1x256xf32>
      %278 = vector.extract_strided_slice %242 {offsets = [0, 48], sizes = [1, 256], strides = [1, 1]} : vector<1x352xf32> to vector<1x256xf32>
      %279 = vector.extract_strided_slice %247 {offsets = [0, 48], sizes = [1, 256], strides = [1, 1]} : vector<1x352xf32> to vector<1x256xf32>
      %c23 = arith.constant 23 : index
      %280 = memref.load %arg3[%c23] : memref<98xf32, #tpu.memory_space<smem>>
      %281 = vector.broadcast %280 : f32 to vector<1x256xf32>
      %282 = arith.mulf %281, %278 : vector<1x256xf32>
      %283 = arith.addf %198, %282 : vector<1x256xf32>
      %c72 = arith.constant 72 : index
      %284 = memref.load %arg3[%c72] : memref<98xf32, #tpu.memory_space<smem>>
      %285 = vector.broadcast %284 : f32 to vector<1x256xf32>
      %286 = arith.mulf %285, %279 : vector<1x256xf32>
      %287 = arith.addf %283, %286 : vector<1x256xf32>
      %288 = vector.extract_strided_slice %242 {offsets = [0, 64], sizes = [1, 256], strides = [1, 1]} : vector<1x352xf32> to vector<1x256xf32>
      %289 = vector.extract_strided_slice %247 {offsets = [0, 64], sizes = [1, 256], strides = [1, 1]} : vector<1x352xf32> to vector<1x256xf32>
      %c30 = arith.constant 30 : index
      %290 = memref.load %arg3[%c30] : memref<98xf32, #tpu.memory_space<smem>>
      %291 = vector.broadcast %290 : f32 to vector<1x256xf32>
      %292 = arith.mulf %291, %288 : vector<1x256xf32>
      %293 = arith.addf %208, %292 : vector<1x256xf32>
      %c79 = arith.constant 79 : index
      %294 = memref.load %arg3[%c79] : memref<98xf32, #tpu.memory_space<smem>>
      %295 = vector.broadcast %294 : f32 to vector<1x256xf32>
      %296 = arith.mulf %295, %289 : vector<1x256xf32>
      %297 = arith.addf %293, %296 : vector<1x256xf32>
      %298 = vector.extract_strided_slice %242 {offsets = [0, 80], sizes = [1, 256], strides = [1, 1]} : vector<1x352xf32> to vector<1x256xf32>
      %299 = vector.extract_strided_slice %247 {offsets = [0, 80], sizes = [1, 256], strides = [1, 1]} : vector<1x352xf32> to vector<1x256xf32>
      %c37 = arith.constant 37 : index
      %300 = memref.load %arg3[%c37] : memref<98xf32, #tpu.memory_space<smem>>
      %301 = vector.broadcast %300 : f32 to vector<1x256xf32>
      %302 = arith.mulf %301, %298 : vector<1x256xf32>
      %303 = arith.addf %218, %302 : vector<1x256xf32>
      %c86 = arith.constant 86 : index
      %304 = memref.load %arg3[%c86] : memref<98xf32, #tpu.memory_space<smem>>
      %305 = vector.broadcast %304 : f32 to vector<1x256xf32>
      %306 = arith.mulf %305, %299 : vector<1x256xf32>
      %307 = arith.addf %303, %306 : vector<1x256xf32>
      %308 = vector.extract_strided_slice %242 {offsets = [0, 96], sizes = [1, 256], strides = [1, 1]} : vector<1x352xf32> to vector<1x256xf32>
      %309 = vector.extract_strided_slice %247 {offsets = [0, 96], sizes = [1, 256], strides = [1, 1]} : vector<1x352xf32> to vector<1x256xf32>
      %c44 = arith.constant 44 : index
      %310 = memref.load %arg3[%c44] : memref<98xf32, #tpu.memory_space<smem>>
      %311 = vector.broadcast %310 : f32 to vector<1x256xf32>
      %312 = arith.mulf %311, %308 : vector<1x256xf32>
      %313 = arith.addf %228, %312 : vector<1x256xf32>
      %c93 = arith.constant 93 : index
      %314 = memref.load %arg3[%c93] : memref<98xf32, #tpu.memory_space<smem>>
      %315 = vector.broadcast %314 : f32 to vector<1x256xf32>
      %316 = arith.mulf %315, %309 : vector<1x256xf32>
      %317 = arith.addf %313, %316 : vector<1x256xf32>
      %c0_i32_51 = arith.constant 0 : i32
      %318 = vector.broadcast %c0_i32_51 : i32 to vector<1x256xi32>
      %319 = arith.addi %41, %318 : vector<1x256xi32>
      %c0_i32_52 = arith.constant 0 : i32
      %320 = vector.broadcast %c0_i32_52 : i32 to vector<1x256xi32>
      %321 = arith.cmpi sge, %319, %320 : vector<1x256xi32>
      %c0_i32_53 = arith.constant 0 : i32
      %322 = vector.broadcast %c0_i32_53 : i32 to vector<1x256xi32>
      %323 = arith.addi %41, %322 : vector<1x256xi32>
      %c16_i32_54 = arith.constant 16 : i32
      %324 = vector.broadcast %c16_i32_54 : i32 to vector<1x256xi32>
      %325 = arith.cmpi slt, %323, %324 : vector<1x256xi32>
      %326 = arith.andi %321, %325 : vector<1x256xi1>
      %327 = tpu.concatenate %42, %24, %42 in 1 : vector<1x3xf32>, vector<1x256xf32>, vector<1x3xf32> -> vector<1x262xf32>
      %328 = vector.extract_strided_slice %327 {offsets = [0, 3], sizes = [1, 256], strides = [1, 1]} : vector<1x262xf32> to vector<1x256xf32>
      %cst_55 = arith.constant 0.000000e+00 : f32
      %329 = vector.broadcast %cst_55 : f32 to vector<1x256xf32>
      %330 = arith.select %326, %328, %329 : vector<1x256xi1>, vector<1x256xf32>
      %331 = tpu.concatenate %43, %330, %43 in 1 : vector<1x48xf32>, vector<1x256xf32>, vector<1x48xf32> -> vector<1x352xf32>
      %332 = tpu.concatenate %42, %22, %42 in 1 : vector<1x3xf32>, vector<1x256xf32>, vector<1x3xf32> -> vector<1x262xf32>
      %333 = vector.extract_strided_slice %332 {offsets = [0, 3], sizes = [1, 256], strides = [1, 1]} : vector<1x262xf32> to vector<1x256xf32>
      %cst_56 = arith.constant 0.000000e+00 : f32
      %334 = vector.broadcast %cst_56 : f32 to vector<1x256xf32>
      %335 = arith.select %326, %333, %334 : vector<1x256xi1>, vector<1x256xf32>
      %336 = tpu.concatenate %43, %335, %43 in 1 : vector<1x48xf32>, vector<1x256xf32>, vector<1x48xf32> -> vector<1x352xf32>
      %337 = vector.extract_strided_slice %331 {offsets = [0, 0], sizes = [1, 256], strides = [1, 1]} : vector<1x352xf32> to vector<1x256xf32>
      %338 = vector.extract_strided_slice %336 {offsets = [0, 0], sizes = [1, 256], strides = [1, 1]} : vector<1x352xf32> to vector<1x256xf32>
      %c3 = arith.constant 3 : index
      %339 = memref.load %arg3[%c3] : memref<98xf32, #tpu.memory_space<smem>>
      %340 = vector.broadcast %339 : f32 to vector<1x256xf32>
      %341 = arith.mulf %340, %337 : vector<1x256xf32>
      %342 = arith.addf %257, %341 : vector<1x256xf32>
      %c52 = arith.constant 52 : index
      %343 = memref.load %arg3[%c52] : memref<98xf32, #tpu.memory_space<smem>>
      %344 = vector.broadcast %343 : f32 to vector<1x256xf32>
      %345 = arith.mulf %344, %338 : vector<1x256xf32>
      %346 = arith.addf %342, %345 : vector<1x256xf32>
      %347 = vector.extract_strided_slice %331 {offsets = [0, 16], sizes = [1, 256], strides = [1, 1]} : vector<1x352xf32> to vector<1x256xf32>
      %348 = vector.extract_strided_slice %336 {offsets = [0, 16], sizes = [1, 256], strides = [1, 1]} : vector<1x352xf32> to vector<1x256xf32>
      %c10 = arith.constant 10 : index
      %349 = memref.load %arg3[%c10] : memref<98xf32, #tpu.memory_space<smem>>
      %350 = vector.broadcast %349 : f32 to vector<1x256xf32>
      %351 = arith.mulf %350, %347 : vector<1x256xf32>
      %352 = arith.addf %267, %351 : vector<1x256xf32>
      %c59 = arith.constant 59 : index
      %353 = memref.load %arg3[%c59] : memref<98xf32, #tpu.memory_space<smem>>
      %354 = vector.broadcast %353 : f32 to vector<1x256xf32>
      %355 = arith.mulf %354, %348 : vector<1x256xf32>
      %356 = arith.addf %352, %355 : vector<1x256xf32>
      %357 = vector.extract_strided_slice %331 {offsets = [0, 32], sizes = [1, 256], strides = [1, 1]} : vector<1x352xf32> to vector<1x256xf32>
      %358 = vector.extract_strided_slice %336 {offsets = [0, 32], sizes = [1, 256], strides = [1, 1]} : vector<1x352xf32> to vector<1x256xf32>
      %c17 = arith.constant 17 : index
      %359 = memref.load %arg3[%c17] : memref<98xf32, #tpu.memory_space<smem>>
      %360 = vector.broadcast %359 : f32 to vector<1x256xf32>
      %361 = arith.mulf %360, %357 : vector<1x256xf32>
      %362 = arith.addf %277, %361 : vector<1x256xf32>
      %c66 = arith.constant 66 : index
      %363 = memref.load %arg3[%c66] : memref<98xf32, #tpu.memory_space<smem>>
      %364 = vector.broadcast %363 : f32 to vector<1x256xf32>
      %365 = arith.mulf %364, %358 : vector<1x256xf32>
      %366 = arith.addf %362, %365 : vector<1x256xf32>
      %367 = vector.extract_strided_slice %331 {offsets = [0, 48], sizes = [1, 256], strides = [1, 1]} : vector<1x352xf32> to vector<1x256xf32>
      %368 = vector.extract_strided_slice %336 {offsets = [0, 48], sizes = [1, 256], strides = [1, 1]} : vector<1x352xf32> to vector<1x256xf32>
      %c24 = arith.constant 24 : index
      %369 = memref.load %arg3[%c24] : memref<98xf32, #tpu.memory_space<smem>>
      %370 = vector.broadcast %369 : f32 to vector<1x256xf32>
      %371 = arith.mulf %370, %367 : vector<1x256xf32>
      %372 = arith.addf %287, %371 : vector<1x256xf32>
      %c73 = arith.constant 73 : index
      %373 = memref.load %arg3[%c73] : memref<98xf32, #tpu.memory_space<smem>>
      %374 = vector.broadcast %373 : f32 to vector<1x256xf32>
      %375 = arith.mulf %374, %368 : vector<1x256xf32>
      %376 = arith.addf %372, %375 : vector<1x256xf32>
      %377 = vector.extract_strided_slice %331 {offsets = [0, 64], sizes = [1, 256], strides = [1, 1]} : vector<1x352xf32> to vector<1x256xf32>
      %378 = vector.extract_strided_slice %336 {offsets = [0, 64], sizes = [1, 256], strides = [1, 1]} : vector<1x352xf32> to vector<1x256xf32>
      %c31 = arith.constant 31 : index
      %379 = memref.load %arg3[%c31] : memref<98xf32, #tpu.memory_space<smem>>
      %380 = vector.broadcast %379 : f32 to vector<1x256xf32>
      %381 = arith.mulf %380, %377 : vector<1x256xf32>
      %382 = arith.addf %297, %381 : vector<1x256xf32>
      %c80 = arith.constant 80 : index
      %383 = memref.load %arg3[%c80] : memref<98xf32, #tpu.memory_space<smem>>
      %384 = vector.broadcast %383 : f32 to vector<1x256xf32>
      %385 = arith.mulf %384, %378 : vector<1x256xf32>
      %386 = arith.addf %382, %385 : vector<1x256xf32>
      %387 = vector.extract_strided_slice %331 {offsets = [0, 80], sizes = [1, 256], strides = [1, 1]} : vector<1x352xf32> to vector<1x256xf32>
      %388 = vector.extract_strided_slice %336 {offsets = [0, 80], sizes = [1, 256], strides = [1, 1]} : vector<1x352xf32> to vector<1x256xf32>
      %c38 = arith.constant 38 : index
      %389 = memref.load %arg3[%c38] : memref<98xf32, #tpu.memory_space<smem>>
      %390 = vector.broadcast %389 : f32 to vector<1x256xf32>
      %391 = arith.mulf %390, %387 : vector<1x256xf32>
      %392 = arith.addf %307, %391 : vector<1x256xf32>
      %c87 = arith.constant 87 : index
      %393 = memref.load %arg3[%c87] : memref<98xf32, #tpu.memory_space<smem>>
      %394 = vector.broadcast %393 : f32 to vector<1x256xf32>
      %395 = arith.mulf %394, %388 : vector<1x256xf32>
      %396 = arith.addf %392, %395 : vector<1x256xf32>
      %397 = vector.extract_strided_slice %331 {offsets = [0, 96], sizes = [1, 256], strides = [1, 1]} : vector<1x352xf32> to vector<1x256xf32>
      %398 = vector.extract_strided_slice %336 {offsets = [0, 96], sizes = [1, 256], strides = [1, 1]} : vector<1x352xf32> to vector<1x256xf32>
      %c45 = arith.constant 45 : index
      %399 = memref.load %arg3[%c45] : memref<98xf32, #tpu.memory_space<smem>>
      %400 = vector.broadcast %399 : f32 to vector<1x256xf32>
      %401 = arith.mulf %400, %397 : vector<1x256xf32>
      %402 = arith.addf %317, %401 : vector<1x256xf32>
      %c94 = arith.constant 94 : index
      %403 = memref.load %arg3[%c94] : memref<98xf32, #tpu.memory_space<smem>>
      %404 = vector.broadcast %403 : f32 to vector<1x256xf32>
      %405 = arith.mulf %404, %398 : vector<1x256xf32>
      %406 = arith.addf %402, %405 : vector<1x256xf32>
      %c1_i32_57 = arith.constant 1 : i32
      %407 = vector.broadcast %c1_i32_57 : i32 to vector<1x256xi32>
      %408 = arith.addi %41, %407 : vector<1x256xi32>
      %c0_i32_58 = arith.constant 0 : i32
      %409 = vector.broadcast %c0_i32_58 : i32 to vector<1x256xi32>
      %410 = arith.cmpi sge, %408, %409 : vector<1x256xi32>
      %c1_i32_59 = arith.constant 1 : i32
      %411 = vector.broadcast %c1_i32_59 : i32 to vector<1x256xi32>
      %412 = arith.addi %41, %411 : vector<1x256xi32>
      %c16_i32_60 = arith.constant 16 : i32
      %413 = vector.broadcast %c16_i32_60 : i32 to vector<1x256xi32>
      %414 = arith.cmpi slt, %412, %413 : vector<1x256xi32>
      %415 = arith.andi %410, %414 : vector<1x256xi1>
      %416 = tpu.concatenate %42, %24, %42 in 1 : vector<1x3xf32>, vector<1x256xf32>, vector<1x3xf32> -> vector<1x262xf32>
      %417 = vector.extract_strided_slice %416 {offsets = [0, 4], sizes = [1, 256], strides = [1, 1]} : vector<1x262xf32> to vector<1x256xf32>
      %cst_61 = arith.constant 0.000000e+00 : f32
      %418 = vector.broadcast %cst_61 : f32 to vector<1x256xf32>
      %419 = arith.select %415, %417, %418 : vector<1x256xi1>, vector<1x256xf32>
      %420 = tpu.concatenate %43, %419, %43 in 1 : vector<1x48xf32>, vector<1x256xf32>, vector<1x48xf32> -> vector<1x352xf32>
      %421 = tpu.concatenate %42, %22, %42 in 1 : vector<1x3xf32>, vector<1x256xf32>, vector<1x3xf32> -> vector<1x262xf32>
      %422 = vector.extract_strided_slice %421 {offsets = [0, 4], sizes = [1, 256], strides = [1, 1]} : vector<1x262xf32> to vector<1x256xf32>
      %cst_62 = arith.constant 0.000000e+00 : f32
      %423 = vector.broadcast %cst_62 : f32 to vector<1x256xf32>
      %424 = arith.select %415, %422, %423 : vector<1x256xi1>, vector<1x256xf32>
      %425 = tpu.concatenate %43, %424, %43 in 1 : vector<1x48xf32>, vector<1x256xf32>, vector<1x48xf32> -> vector<1x352xf32>
      %426 = vector.extract_strided_slice %420 {offsets = [0, 0], sizes = [1, 256], strides = [1, 1]} : vector<1x352xf32> to vector<1x256xf32>
      %427 = vector.extract_strided_slice %425 {offsets = [0, 0], sizes = [1, 256], strides = [1, 1]} : vector<1x352xf32> to vector<1x256xf32>
      %c4 = arith.constant 4 : index
      %428 = memref.load %arg3[%c4] : memref<98xf32, #tpu.memory_space<smem>>
      %429 = vector.broadcast %428 : f32 to vector<1x256xf32>
      %430 = arith.mulf %429, %426 : vector<1x256xf32>
      %431 = arith.addf %346, %430 : vector<1x256xf32>
      %c53 = arith.constant 53 : index
      %432 = memref.load %arg3[%c53] : memref<98xf32, #tpu.memory_space<smem>>
      %433 = vector.broadcast %432 : f32 to vector<1x256xf32>
      %434 = arith.mulf %433, %427 : vector<1x256xf32>
      %435 = arith.addf %431, %434 : vector<1x256xf32>
      %436 = vector.extract_strided_slice %420 {offsets = [0, 16], sizes = [1, 256], strides = [1, 1]} : vector<1x352xf32> to vector<1x256xf32>
      %437 = vector.extract_strided_slice %425 {offsets = [0, 16], sizes = [1, 256], strides = [1, 1]} : vector<1x352xf32> to vector<1x256xf32>
      %c11 = arith.constant 11 : index
      %438 = memref.load %arg3[%c11] : memref<98xf32, #tpu.memory_space<smem>>
      %439 = vector.broadcast %438 : f32 to vector<1x256xf32>
      %440 = arith.mulf %439, %436 : vector<1x256xf32>
      %441 = arith.addf %356, %440 : vector<1x256xf32>
      %c60 = arith.constant 60 : index
      %442 = memref.load %arg3[%c60] : memref<98xf32, #tpu.memory_space<smem>>
      %443 = vector.broadcast %442 : f32 to vector<1x256xf32>
      %444 = arith.mulf %443, %437 : vector<1x256xf32>
      %445 = arith.addf %441, %444 : vector<1x256xf32>
      %446 = vector.extract_strided_slice %420 {offsets = [0, 32], sizes = [1, 256], strides = [1, 1]} : vector<1x352xf32> to vector<1x256xf32>
      %447 = vector.extract_strided_slice %425 {offsets = [0, 32], sizes = [1, 256], strides = [1, 1]} : vector<1x352xf32> to vector<1x256xf32>
      %c18 = arith.constant 18 : index
      %448 = memref.load %arg3[%c18] : memref<98xf32, #tpu.memory_space<smem>>
      %449 = vector.broadcast %448 : f32 to vector<1x256xf32>
      %450 = arith.mulf %449, %446 : vector<1x256xf32>
      %451 = arith.addf %366, %450 : vector<1x256xf32>
      %c67 = arith.constant 67 : index
      %452 = memref.load %arg3[%c67] : memref<98xf32, #tpu.memory_space<smem>>
      %453 = vector.broadcast %452 : f32 to vector<1x256xf32>
      %454 = arith.mulf %453, %447 : vector<1x256xf32>
      %455 = arith.addf %451, %454 : vector<1x256xf32>
      %456 = vector.extract_strided_slice %420 {offsets = [0, 48], sizes = [1, 256], strides = [1, 1]} : vector<1x352xf32> to vector<1x256xf32>
      %457 = vector.extract_strided_slice %425 {offsets = [0, 48], sizes = [1, 256], strides = [1, 1]} : vector<1x352xf32> to vector<1x256xf32>
      %c25 = arith.constant 25 : index
      %458 = memref.load %arg3[%c25] : memref<98xf32, #tpu.memory_space<smem>>
      %459 = vector.broadcast %458 : f32 to vector<1x256xf32>
      %460 = arith.mulf %459, %456 : vector<1x256xf32>
      %461 = arith.addf %376, %460 : vector<1x256xf32>
      %c74 = arith.constant 74 : index
      %462 = memref.load %arg3[%c74] : memref<98xf32, #tpu.memory_space<smem>>
      %463 = vector.broadcast %462 : f32 to vector<1x256xf32>
      %464 = arith.mulf %463, %457 : vector<1x256xf32>
      %465 = arith.addf %461, %464 : vector<1x256xf32>
      %466 = vector.extract_strided_slice %420 {offsets = [0, 64], sizes = [1, 256], strides = [1, 1]} : vector<1x352xf32> to vector<1x256xf32>
      %467 = vector.extract_strided_slice %425 {offsets = [0, 64], sizes = [1, 256], strides = [1, 1]} : vector<1x352xf32> to vector<1x256xf32>
      %c32 = arith.constant 32 : index
      %468 = memref.load %arg3[%c32] : memref<98xf32, #tpu.memory_space<smem>>
      %469 = vector.broadcast %468 : f32 to vector<1x256xf32>
      %470 = arith.mulf %469, %466 : vector<1x256xf32>
      %471 = arith.addf %386, %470 : vector<1x256xf32>
      %c81 = arith.constant 81 : index
      %472 = memref.load %arg3[%c81] : memref<98xf32, #tpu.memory_space<smem>>
      %473 = vector.broadcast %472 : f32 to vector<1x256xf32>
      %474 = arith.mulf %473, %467 : vector<1x256xf32>
      %475 = arith.addf %471, %474 : vector<1x256xf32>
      %476 = vector.extract_strided_slice %420 {offsets = [0, 80], sizes = [1, 256], strides = [1, 1]} : vector<1x352xf32> to vector<1x256xf32>
      %477 = vector.extract_strided_slice %425 {offsets = [0, 80], sizes = [1, 256], strides = [1, 1]} : vector<1x352xf32> to vector<1x256xf32>
      %c39 = arith.constant 39 : index
      %478 = memref.load %arg3[%c39] : memref<98xf32, #tpu.memory_space<smem>>
      %479 = vector.broadcast %478 : f32 to vector<1x256xf32>
      %480 = arith.mulf %479, %476 : vector<1x256xf32>
      %481 = arith.addf %396, %480 : vector<1x256xf32>
      %c88 = arith.constant 88 : index
      %482 = memref.load %arg3[%c88] : memref<98xf32, #tpu.memory_space<smem>>
      %483 = vector.broadcast %482 : f32 to vector<1x256xf32>
      %484 = arith.mulf %483, %477 : vector<1x256xf32>
      %485 = arith.addf %481, %484 : vector<1x256xf32>
      %486 = vector.extract_strided_slice %420 {offsets = [0, 96], sizes = [1, 256], strides = [1, 1]} : vector<1x352xf32> to vector<1x256xf32>
      %487 = vector.extract_strided_slice %425 {offsets = [0, 96], sizes = [1, 256], strides = [1, 1]} : vector<1x352xf32> to vector<1x256xf32>
      %c46 = arith.constant 46 : index
      %488 = memref.load %arg3[%c46] : memref<98xf32, #tpu.memory_space<smem>>
      %489 = vector.broadcast %488 : f32 to vector<1x256xf32>
      %490 = arith.mulf %489, %486 : vector<1x256xf32>
      %491 = arith.addf %406, %490 : vector<1x256xf32>
      %c95 = arith.constant 95 : index
      %492 = memref.load %arg3[%c95] : memref<98xf32, #tpu.memory_space<smem>>
      %493 = vector.broadcast %492 : f32 to vector<1x256xf32>
      %494 = arith.mulf %493, %487 : vector<1x256xf32>
      %495 = arith.addf %491, %494 : vector<1x256xf32>
      %c2_i32 = arith.constant 2 : i32
      %496 = vector.broadcast %c2_i32 : i32 to vector<1x256xi32>
      %497 = arith.addi %41, %496 : vector<1x256xi32>
      %c0_i32_63 = arith.constant 0 : i32
      %498 = vector.broadcast %c0_i32_63 : i32 to vector<1x256xi32>
      %499 = arith.cmpi sge, %497, %498 : vector<1x256xi32>
      %c2_i32_64 = arith.constant 2 : i32
      %500 = vector.broadcast %c2_i32_64 : i32 to vector<1x256xi32>
      %501 = arith.addi %41, %500 : vector<1x256xi32>
      %c16_i32_65 = arith.constant 16 : i32
      %502 = vector.broadcast %c16_i32_65 : i32 to vector<1x256xi32>
      %503 = arith.cmpi slt, %501, %502 : vector<1x256xi32>
      %504 = arith.andi %499, %503 : vector<1x256xi1>
      %505 = tpu.concatenate %42, %24, %42 in 1 : vector<1x3xf32>, vector<1x256xf32>, vector<1x3xf32> -> vector<1x262xf32>
      %506 = vector.extract_strided_slice %505 {offsets = [0, 5], sizes = [1, 256], strides = [1, 1]} : vector<1x262xf32> to vector<1x256xf32>
      %cst_66 = arith.constant 0.000000e+00 : f32
      %507 = vector.broadcast %cst_66 : f32 to vector<1x256xf32>
      %508 = arith.select %504, %506, %507 : vector<1x256xi1>, vector<1x256xf32>
      %509 = tpu.concatenate %43, %508, %43 in 1 : vector<1x48xf32>, vector<1x256xf32>, vector<1x48xf32> -> vector<1x352xf32>
      %510 = tpu.concatenate %42, %22, %42 in 1 : vector<1x3xf32>, vector<1x256xf32>, vector<1x3xf32> -> vector<1x262xf32>
      %511 = vector.extract_strided_slice %510 {offsets = [0, 5], sizes = [1, 256], strides = [1, 1]} : vector<1x262xf32> to vector<1x256xf32>
      %cst_67 = arith.constant 0.000000e+00 : f32
      %512 = vector.broadcast %cst_67 : f32 to vector<1x256xf32>
      %513 = arith.select %504, %511, %512 : vector<1x256xi1>, vector<1x256xf32>
      %514 = tpu.concatenate %43, %513, %43 in 1 : vector<1x48xf32>, vector<1x256xf32>, vector<1x48xf32> -> vector<1x352xf32>
      %515 = vector.extract_strided_slice %509 {offsets = [0, 0], sizes = [1, 256], strides = [1, 1]} : vector<1x352xf32> to vector<1x256xf32>
      %516 = vector.extract_strided_slice %514 {offsets = [0, 0], sizes = [1, 256], strides = [1, 1]} : vector<1x352xf32> to vector<1x256xf32>
      %c5 = arith.constant 5 : index
      %517 = memref.load %arg3[%c5] : memref<98xf32, #tpu.memory_space<smem>>
      %518 = vector.broadcast %517 : f32 to vector<1x256xf32>
      %519 = arith.mulf %518, %515 : vector<1x256xf32>
      %520 = arith.addf %435, %519 : vector<1x256xf32>
      %c54 = arith.constant 54 : index
      %521 = memref.load %arg3[%c54] : memref<98xf32, #tpu.memory_space<smem>>
      %522 = vector.broadcast %521 : f32 to vector<1x256xf32>
      %523 = arith.mulf %522, %516 : vector<1x256xf32>
      %524 = arith.addf %520, %523 : vector<1x256xf32>
      %525 = vector.extract_strided_slice %509 {offsets = [0, 16], sizes = [1, 256], strides = [1, 1]} : vector<1x352xf32> to vector<1x256xf32>
      %526 = vector.extract_strided_slice %514 {offsets = [0, 16], sizes = [1, 256], strides = [1, 1]} : vector<1x352xf32> to vector<1x256xf32>
      %c12 = arith.constant 12 : index
      %527 = memref.load %arg3[%c12] : memref<98xf32, #tpu.memory_space<smem>>
      %528 = vector.broadcast %527 : f32 to vector<1x256xf32>
      %529 = arith.mulf %528, %525 : vector<1x256xf32>
      %530 = arith.addf %445, %529 : vector<1x256xf32>
      %c61 = arith.constant 61 : index
      %531 = memref.load %arg3[%c61] : memref<98xf32, #tpu.memory_space<smem>>
      %532 = vector.broadcast %531 : f32 to vector<1x256xf32>
      %533 = arith.mulf %532, %526 : vector<1x256xf32>
      %534 = arith.addf %530, %533 : vector<1x256xf32>
      %535 = vector.extract_strided_slice %509 {offsets = [0, 32], sizes = [1, 256], strides = [1, 1]} : vector<1x352xf32> to vector<1x256xf32>
      %536 = vector.extract_strided_slice %514 {offsets = [0, 32], sizes = [1, 256], strides = [1, 1]} : vector<1x352xf32> to vector<1x256xf32>
      %c19 = arith.constant 19 : index
      %537 = memref.load %arg3[%c19] : memref<98xf32, #tpu.memory_space<smem>>
      %538 = vector.broadcast %537 : f32 to vector<1x256xf32>
      %539 = arith.mulf %538, %535 : vector<1x256xf32>
      %540 = arith.addf %455, %539 : vector<1x256xf32>
      %c68 = arith.constant 68 : index
      %541 = memref.load %arg3[%c68] : memref<98xf32, #tpu.memory_space<smem>>
      %542 = vector.broadcast %541 : f32 to vector<1x256xf32>
      %543 = arith.mulf %542, %536 : vector<1x256xf32>
      %544 = arith.addf %540, %543 : vector<1x256xf32>
      %545 = vector.extract_strided_slice %509 {offsets = [0, 48], sizes = [1, 256], strides = [1, 1]} : vector<1x352xf32> to vector<1x256xf32>
      %546 = vector.extract_strided_slice %514 {offsets = [0, 48], sizes = [1, 256], strides = [1, 1]} : vector<1x352xf32> to vector<1x256xf32>
      %c26 = arith.constant 26 : index
      %547 = memref.load %arg3[%c26] : memref<98xf32, #tpu.memory_space<smem>>
      %548 = vector.broadcast %547 : f32 to vector<1x256xf32>
      %549 = arith.mulf %548, %545 : vector<1x256xf32>
      %550 = arith.addf %465, %549 : vector<1x256xf32>
      %c75 = arith.constant 75 : index
      %551 = memref.load %arg3[%c75] : memref<98xf32, #tpu.memory_space<smem>>
      %552 = vector.broadcast %551 : f32 to vector<1x256xf32>
      %553 = arith.mulf %552, %546 : vector<1x256xf32>
      %554 = arith.addf %550, %553 : vector<1x256xf32>
      %555 = vector.extract_strided_slice %509 {offsets = [0, 64], sizes = [1, 256], strides = [1, 1]} : vector<1x352xf32> to vector<1x256xf32>
      %556 = vector.extract_strided_slice %514 {offsets = [0, 64], sizes = [1, 256], strides = [1, 1]} : vector<1x352xf32> to vector<1x256xf32>
      %c33 = arith.constant 33 : index
      %557 = memref.load %arg3[%c33] : memref<98xf32, #tpu.memory_space<smem>>
      %558 = vector.broadcast %557 : f32 to vector<1x256xf32>
      %559 = arith.mulf %558, %555 : vector<1x256xf32>
      %560 = arith.addf %475, %559 : vector<1x256xf32>
      %c82 = arith.constant 82 : index
      %561 = memref.load %arg3[%c82] : memref<98xf32, #tpu.memory_space<smem>>
      %562 = vector.broadcast %561 : f32 to vector<1x256xf32>
      %563 = arith.mulf %562, %556 : vector<1x256xf32>
      %564 = arith.addf %560, %563 : vector<1x256xf32>
      %565 = vector.extract_strided_slice %509 {offsets = [0, 80], sizes = [1, 256], strides = [1, 1]} : vector<1x352xf32> to vector<1x256xf32>
      %566 = vector.extract_strided_slice %514 {offsets = [0, 80], sizes = [1, 256], strides = [1, 1]} : vector<1x352xf32> to vector<1x256xf32>
      %c40 = arith.constant 40 : index
      %567 = memref.load %arg3[%c40] : memref<98xf32, #tpu.memory_space<smem>>
      %568 = vector.broadcast %567 : f32 to vector<1x256xf32>
      %569 = arith.mulf %568, %565 : vector<1x256xf32>
      %570 = arith.addf %485, %569 : vector<1x256xf32>
      %c89 = arith.constant 89 : index
      %571 = memref.load %arg3[%c89] : memref<98xf32, #tpu.memory_space<smem>>
      %572 = vector.broadcast %571 : f32 to vector<1x256xf32>
      %573 = arith.mulf %572, %566 : vector<1x256xf32>
      %574 = arith.addf %570, %573 : vector<1x256xf32>
      %575 = vector.extract_strided_slice %509 {offsets = [0, 96], sizes = [1, 256], strides = [1, 1]} : vector<1x352xf32> to vector<1x256xf32>
      %576 = vector.extract_strided_slice %514 {offsets = [0, 96], sizes = [1, 256], strides = [1, 1]} : vector<1x352xf32> to vector<1x256xf32>
      %c47 = arith.constant 47 : index
      %577 = memref.load %arg3[%c47] : memref<98xf32, #tpu.memory_space<smem>>
      %578 = vector.broadcast %577 : f32 to vector<1x256xf32>
      %579 = arith.mulf %578, %575 : vector<1x256xf32>
      %580 = arith.addf %495, %579 : vector<1x256xf32>
      %c96 = arith.constant 96 : index
      %581 = memref.load %arg3[%c96] : memref<98xf32, #tpu.memory_space<smem>>
      %582 = vector.broadcast %581 : f32 to vector<1x256xf32>
      %583 = arith.mulf %582, %576 : vector<1x256xf32>
      %584 = arith.addf %580, %583 : vector<1x256xf32>
      %c3_i32 = arith.constant 3 : i32
      %585 = vector.broadcast %c3_i32 : i32 to vector<1x256xi32>
      %586 = arith.addi %41, %585 : vector<1x256xi32>
      %c0_i32_68 = arith.constant 0 : i32
      %587 = vector.broadcast %c0_i32_68 : i32 to vector<1x256xi32>
      %588 = arith.cmpi sge, %586, %587 : vector<1x256xi32>
      %c3_i32_69 = arith.constant 3 : i32
      %589 = vector.broadcast %c3_i32_69 : i32 to vector<1x256xi32>
      %590 = arith.addi %41, %589 : vector<1x256xi32>
      %c16_i32_70 = arith.constant 16 : i32
      %591 = vector.broadcast %c16_i32_70 : i32 to vector<1x256xi32>
      %592 = arith.cmpi slt, %590, %591 : vector<1x256xi32>
      %593 = arith.andi %588, %592 : vector<1x256xi1>
      %594 = tpu.concatenate %42, %24, %42 in 1 : vector<1x3xf32>, vector<1x256xf32>, vector<1x3xf32> -> vector<1x262xf32>
      %595 = vector.extract_strided_slice %594 {offsets = [0, 6], sizes = [1, 256], strides = [1, 1]} : vector<1x262xf32> to vector<1x256xf32>
      %cst_71 = arith.constant 0.000000e+00 : f32
      %596 = vector.broadcast %cst_71 : f32 to vector<1x256xf32>
      %597 = arith.select %593, %595, %596 : vector<1x256xi1>, vector<1x256xf32>
      %598 = tpu.concatenate %43, %597, %43 in 1 : vector<1x48xf32>, vector<1x256xf32>, vector<1x48xf32> -> vector<1x352xf32>
      %599 = tpu.concatenate %42, %22, %42 in 1 : vector<1x3xf32>, vector<1x256xf32>, vector<1x3xf32> -> vector<1x262xf32>
      %600 = vector.extract_strided_slice %599 {offsets = [0, 6], sizes = [1, 256], strides = [1, 1]} : vector<1x262xf32> to vector<1x256xf32>
      %cst_72 = arith.constant 0.000000e+00 : f32
      %601 = vector.broadcast %cst_72 : f32 to vector<1x256xf32>
      %602 = arith.select %593, %600, %601 : vector<1x256xi1>, vector<1x256xf32>
      %603 = tpu.concatenate %43, %602, %43 in 1 : vector<1x48xf32>, vector<1x256xf32>, vector<1x48xf32> -> vector<1x352xf32>
      %604 = vector.extract_strided_slice %598 {offsets = [0, 0], sizes = [1, 256], strides = [1, 1]} : vector<1x352xf32> to vector<1x256xf32>
      %605 = vector.extract_strided_slice %603 {offsets = [0, 0], sizes = [1, 256], strides = [1, 1]} : vector<1x352xf32> to vector<1x256xf32>
      %c6 = arith.constant 6 : index
      %606 = memref.load %arg3[%c6] : memref<98xf32, #tpu.memory_space<smem>>
      %607 = vector.broadcast %606 : f32 to vector<1x256xf32>
      %608 = arith.mulf %607, %604 : vector<1x256xf32>
      %609 = arith.addf %524, %608 : vector<1x256xf32>
      %c55 = arith.constant 55 : index
      %610 = memref.load %arg3[%c55] : memref<98xf32, #tpu.memory_space<smem>>
      %611 = vector.broadcast %610 : f32 to vector<1x256xf32>
      %612 = arith.mulf %611, %605 : vector<1x256xf32>
      %613 = arith.addf %609, %612 : vector<1x256xf32>
      %614 = vector.extract_strided_slice %598 {offsets = [0, 16], sizes = [1, 256], strides = [1, 1]} : vector<1x352xf32> to vector<1x256xf32>
      %615 = vector.extract_strided_slice %603 {offsets = [0, 16], sizes = [1, 256], strides = [1, 1]} : vector<1x352xf32> to vector<1x256xf32>
      %c13 = arith.constant 13 : index
      %616 = memref.load %arg3[%c13] : memref<98xf32, #tpu.memory_space<smem>>
      %617 = vector.broadcast %616 : f32 to vector<1x256xf32>
      %618 = arith.mulf %617, %614 : vector<1x256xf32>
      %619 = arith.addf %534, %618 : vector<1x256xf32>
      %c62 = arith.constant 62 : index
      %620 = memref.load %arg3[%c62] : memref<98xf32, #tpu.memory_space<smem>>
      %621 = vector.broadcast %620 : f32 to vector<1x256xf32>
      %622 = arith.mulf %621, %615 : vector<1x256xf32>
      %623 = arith.addf %619, %622 : vector<1x256xf32>
      %624 = vector.extract_strided_slice %598 {offsets = [0, 32], sizes = [1, 256], strides = [1, 1]} : vector<1x352xf32> to vector<1x256xf32>
      %625 = vector.extract_strided_slice %603 {offsets = [0, 32], sizes = [1, 256], strides = [1, 1]} : vector<1x352xf32> to vector<1x256xf32>
      %c20 = arith.constant 20 : index
      %626 = memref.load %arg3[%c20] : memref<98xf32, #tpu.memory_space<smem>>
      %627 = vector.broadcast %626 : f32 to vector<1x256xf32>
      %628 = arith.mulf %627, %624 : vector<1x256xf32>
      %629 = arith.addf %544, %628 : vector<1x256xf32>
      %c69 = arith.constant 69 : index
      %630 = memref.load %arg3[%c69] : memref<98xf32, #tpu.memory_space<smem>>
      %631 = vector.broadcast %630 : f32 to vector<1x256xf32>
      %632 = arith.mulf %631, %625 : vector<1x256xf32>
      %633 = arith.addf %629, %632 : vector<1x256xf32>
      %634 = vector.extract_strided_slice %598 {offsets = [0, 48], sizes = [1, 256], strides = [1, 1]} : vector<1x352xf32> to vector<1x256xf32>
      %635 = vector.extract_strided_slice %603 {offsets = [0, 48], sizes = [1, 256], strides = [1, 1]} : vector<1x352xf32> to vector<1x256xf32>
      %c27 = arith.constant 27 : index
      %636 = memref.load %arg3[%c27] : memref<98xf32, #tpu.memory_space<smem>>
      %637 = vector.broadcast %636 : f32 to vector<1x256xf32>
      %638 = arith.mulf %637, %634 : vector<1x256xf32>
      %639 = arith.addf %554, %638 : vector<1x256xf32>
      %c76 = arith.constant 76 : index
      %640 = memref.load %arg3[%c76] : memref<98xf32, #tpu.memory_space<smem>>
      %641 = vector.broadcast %640 : f32 to vector<1x256xf32>
      %642 = arith.mulf %641, %635 : vector<1x256xf32>
      %643 = arith.addf %639, %642 : vector<1x256xf32>
      %644 = vector.extract_strided_slice %598 {offsets = [0, 64], sizes = [1, 256], strides = [1, 1]} : vector<1x352xf32> to vector<1x256xf32>
      %645 = vector.extract_strided_slice %603 {offsets = [0, 64], sizes = [1, 256], strides = [1, 1]} : vector<1x352xf32> to vector<1x256xf32>
      %c34 = arith.constant 34 : index
      %646 = memref.load %arg3[%c34] : memref<98xf32, #tpu.memory_space<smem>>
      %647 = vector.broadcast %646 : f32 to vector<1x256xf32>
      %648 = arith.mulf %647, %644 : vector<1x256xf32>
      %649 = arith.addf %564, %648 : vector<1x256xf32>
      %c83 = arith.constant 83 : index
      %650 = memref.load %arg3[%c83] : memref<98xf32, #tpu.memory_space<smem>>
      %651 = vector.broadcast %650 : f32 to vector<1x256xf32>
      %652 = arith.mulf %651, %645 : vector<1x256xf32>
      %653 = arith.addf %649, %652 : vector<1x256xf32>
      %654 = vector.extract_strided_slice %598 {offsets = [0, 80], sizes = [1, 256], strides = [1, 1]} : vector<1x352xf32> to vector<1x256xf32>
      %655 = vector.extract_strided_slice %603 {offsets = [0, 80], sizes = [1, 256], strides = [1, 1]} : vector<1x352xf32> to vector<1x256xf32>
      %c41 = arith.constant 41 : index
      %656 = memref.load %arg3[%c41] : memref<98xf32, #tpu.memory_space<smem>>
      %657 = vector.broadcast %656 : f32 to vector<1x256xf32>
      %658 = arith.mulf %657, %654 : vector<1x256xf32>
      %659 = arith.addf %574, %658 : vector<1x256xf32>
      %c90 = arith.constant 90 : index
      %660 = memref.load %arg3[%c90] : memref<98xf32, #tpu.memory_space<smem>>
      %661 = vector.broadcast %660 : f32 to vector<1x256xf32>
      %662 = arith.mulf %661, %655 : vector<1x256xf32>
      %663 = arith.addf %659, %662 : vector<1x256xf32>
      %664 = vector.extract_strided_slice %598 {offsets = [0, 96], sizes = [1, 256], strides = [1, 1]} : vector<1x352xf32> to vector<1x256xf32>
      %665 = vector.extract_strided_slice %603 {offsets = [0, 96], sizes = [1, 256], strides = [1, 1]} : vector<1x352xf32> to vector<1x256xf32>
      %c48 = arith.constant 48 : index
      %666 = memref.load %arg3[%c48] : memref<98xf32, #tpu.memory_space<smem>>
      %667 = vector.broadcast %666 : f32 to vector<1x256xf32>
      %668 = arith.mulf %667, %664 : vector<1x256xf32>
      %669 = arith.addf %584, %668 : vector<1x256xf32>
      %c97 = arith.constant 97 : index
      %670 = memref.load %arg3[%c97] : memref<98xf32, #tpu.memory_space<smem>>
      %671 = vector.broadcast %670 : f32 to vector<1x256xf32>
      %672 = arith.mulf %671, %665 : vector<1x256xf32>
      %673 = arith.addf %669, %672 : vector<1x256xf32>
      %674 = arith.addf %613, %623 : vector<1x256xf32>
      %675 = arith.addf %633, %643 : vector<1x256xf32>
      %676 = arith.addf %653, %663 : vector<1x256xf32>
      %677 = arith.addf %674, %675 : vector<1x256xf32>
      %678 = arith.addf %676, %673 : vector<1x256xf32>
      %679 = arith.addf %677, %678 : vector<1x256xf32>
      %680 = arith.negf %679 : vector<1x256xf32>
      %681 = math.exp %680 : vector<1x256xf32>
      %cst_73 = arith.constant 1.000000e+00 : f32
      %682 = vector.broadcast %cst_73 : f32 to vector<1x256xf32>
      %683 = arith.addf %682, %681 : vector<1x256xf32>
      %684 = arith.divf %682, %683 : vector<1x256xf32>
      %c0_74 = arith.constant 0 : index
      %c0_75 = arith.constant 0 : index
      %c0_76 = arith.constant 0 : index
      %685 = vector.load %arg4[%c0_74, %c0_75, %c0_76] : memref<1x4x256xf32, #tpu.memory_space<vmem>>, vector<1x4x256xf32>
      %686 = vector.shape_cast %685 : vector<1x4x256xf32> to vector<4x256xf32>
      %687 = vector.broadcast %684 : vector<1x256xf32> to vector<4x256xf32>
      %688 = arith.mulf %686, %687 : vector<4x256xf32>
      %c0_77 = arith.constant 0 : index
      %c0_78 = arith.constant 0 : index
      %c0_79 = arith.constant 0 : index
      %689 = vector.load %arg4[%c0_77, %c0_78, %c0_79] : memref<1x4x256xf32, #tpu.memory_space<vmem>>, vector<1x4x256xf32>
      %690 = vector.shape_cast %689 : vector<1x4x256xf32> to vector<4x256xf32>
      %691 = vector.shape_cast %688 : vector<4x256xf32> to vector<1x4x256xf32>
      tpu.vector_store %arg4[%c0_77, %c0_78, %c0_79], %691 {strides = array<i32>} : memref<1x4x256xf32, #tpu.memory_space<vmem>>, vector<1x4x256xf32>,
    } else {
    }
    return
  }
  func.func @transform_0(%arg0: i32, %arg1: i32) -> (i32, i32, i32) {
    %c0_i32 = arith.constant 0 : i32
    %c0_i32_0 = arith.constant 0 : i32
    return %arg0, %arg1, %c0_i32 : i32, i32, i32
  }
  func.func @transform_1(%arg0: i32, %arg1: i32) -> i32 {
    %c0_i32 = arith.constant 0 : i32
    %c0_i32_0 = arith.constant 0 : i32
    return %c0_i32 : i32
  }
  func.func @transform_2(%arg0: i32, %arg1: i32) -> (i32, i32, i32) {
    %c0_i32 = arith.constant 0 : i32
    %c0_i32_0 = arith.constant 0 : i32
    %c0_i32_1 = arith.constant 0 : i32
    return %arg0, %c0_i32, %c0_i32_0 : i32, i32, i32
  }
}

</mosaic_0001>

<llo_original>
// kernel: tpu_custom_call.1
$region0: #{tpu_custom_call.1}
  #allocation0 [shape = 'u32[]', space=smem, size = 0x4, offset = 0x4, fixed_abs, tag = 'smem constant byte address 0x4 - core index']
  #allocation1 [shape = 'u32[144,128]{1,0:T(1,128)}', space=vmem, size = 0x12000, scoped, tag = 'internal scratch']
  #allocation2 [shape = 'f32[1,256]{1,0:T(1,128)}', space=vmem, size = 0x400, scoped, tag = 'scratch operand']
  #allocation3 [shape = 'f32[1,256]{1,0:T(1,128)}', space=vmem, size = 0x400, scoped, tag = 'scratch operand']
  %s0 = inlined_call_operand.hbm [shape: f32[2,4,256], index: 0, kind: input, shape index: {}]
  %s1 = inlined_call_operand.vmem [shape: f32[98], index: 1, kind: input, shape index: {}]
  %s2 = inlined_call_operand.hbm [shape: f32[2,4,256], index: 2, kind: output, shape index: {}]
  %s3 = sld [smem:[#allocation0]]
  $region57: #{tpu_custom_call.1} parent=0
    _
  %s5 = ssub.s32 1, %s3
  %s6 = scalar_select 0, %s5, %s3
  $region1: #{tpu_custom_call.1} parent=0
    #allocation4 [shape = 'u8[8192]{0}', space=vmem, size = 0x2000, scoped, tag = 'input window, operand 0']
    #allocation5 [shape = 's32[2]{0}', space=sflag, size = 0x8, scoped, tag = 'scoped memory for tpu_custom_call.1']
    #allocation6 [shape = 's32[2]{0}', space=sflag, size = 0x8, scoped, tag = 'scoped memory for tpu_custom_call.1']
    #allocation7 [shape = 's32[2]{0}', space=sflag, size = 0x8, scoped, tag = 'scoped memory for tpu_custom_call.1']
    #allocation8 [shape = 'u8[512]{0}', space=smem, size = 0x200, scoped, tag = 'input window, operand 1, single buffered']
    #allocation9 [shape = 'u8[8192]{0}', space=vmem, size = 0x2000, scoped, tag = 'output window, operand 0']
    %7 = vsyncpa [#allocation5], 0
    %s8 = scalar_lea.sflag [#allocation5], 1
    %9 = vsyncpa %s8, 0
    %10 = vsyncpa [#allocation7], 0
    %11 = vsyncpa [#allocation6], 0
    %s12 = scalar_lea.sflag [#allocation6], 1
    %13 = vsyncpa %s12, 0
    loop: start=0, step=1, limit=4
    $region2: #{tpu_custom_call.1} parent=1 // loop_pre_header
      _
    $region3: #{tpu_custom_call.1} parent=1 // loop_header
      %s15 = sphi 0, %s19
      %p16 = scmp.ge.s32.totalorder %s15, 4
      %s22 = sphi 0, %s34
      %s23 = sphi 0, %s30
      %s24 = sphi 0, %s22
      %s25 = sphi 0, %s23
      %s26 = sphi 0, %s24
      %s27 = sphi 0, %s25
      %s39 = sphi 0, %s41
      %s42 = sphi 0, %s39
      %s43 = sphi 0, %s42
      %s59 = sphi 0, %s43
      %s63 = sphi 0, %s63
      %s65 = sphi 0, %s63
      %s66 = sphi 0, %s65
      %s80 = sphi 0, %s66
      %s86 = sphi 0, %s88
      %s89 = sphi 0, %s86
      %s90 = sphi 0, %s89
      %s106 = sphi 0, %s90
    $region4: #{tpu_custom_call.1} parent=1 // loop_header_branch
      %18 = sbr.rel (%p16) target = $region8
    $region5: #{tpu_custom_call.1} parent=1 // loop_body
      %s20 = ssub.s32 %s15, 1
      %s21 = ssub.s32 %s15, 2
      %s28 = sadd.s32 1, %s23
      %p29 = scmp.ge.s32.totalorder %s28, 1
      %s30 = scalar_select %p29, 0, %s28
      %s31 = sadd.s32 1, %s22
      %s32 = scalar_select %p29, %s31, %s22
      %p33 = scmp.ge.s32.totalorder %s32, 2
      %s34 = scalar_select %p33, 0, %s32
      %s35 = ssub.s32 %s22, %s34
      %s36 = ssub.s32 %s23, %s30
      %s37 = sor.u32 %s35, %s36
      %p38 = scmp.eq.s32.totalorder %s37, 0
      %s40 = sadd.s32 %s39, 1
      %s41 = scalar_select %p38, %s39, %s40
      %p44 = pneg %p38
      %p45 = scmp.eq.s32.totalorder %s15, 1
      %p46 = por %p44, %p45
      %p47 = scmp.ne.s32.totalorder %s39, %s42
      %p48 = scmp.eq.s32.totalorder %s15, 0
      %p49 = por %p47, %p48
      %p50 = scmp.ne.s32.totalorder %s39, %s42
      %p51 = scmp.eq.s32.totalorder %s20, 1
      %p52 = por %p50, %p51
      %p53 = scmp.ne.s32.totalorder %s42, %s43
      %p54 = scmp.eq.s32.totalorder %s20, 0
      %p55 = por %p53, %p54
      %p56 = scmp.ne.s32.totalorder %s42, %s43
      %p57 = scmp.eq.s32.totalorder %s21, 1
      %p58 = por %p56, %p57
      %p60 = scmp.ne.s32.totalorder %s43, %s59
      %p61 = scmp.eq.s32.totalorder %s21, 0
      %p62 = por %p60, %p61
      %s64 = sadd.s32 %s63, 1
      %p67 = scmp.eq.s32.totalorder %s15, 1
      %p68 = scmp.ne.s32.totalorder %s63, %s65
      %p69 = scmp.eq.s32.totalorder %s15, 0
      %p70 = por %p68, %p69
      %p71 = scmp.ne.s32.totalorder %s63, %s65
      %p72 = scmp.eq.s32.totalorder %s20, 1
      %p73 = por %p71, %p72
      %p74 = scmp.ne.s32.totalorder %s65, %s66
      %p75 = scmp.eq.s32.totalorder %s20, 0
      %p76 = por %p74, %p75
      %p77 = scmp.ne.s32.totalorder %s65, %s66
      %p78 = scmp.eq.s32.totalorder %s21, 1
      %p79 = por %p77, %p78
      %p81 = scmp.ne.s32.totalorder %s66, %s80
      %p82 = scmp.eq.s32.totalorder %s21, 0
      %p83 = por %p81, %p82
      %s84 = ssub.s32 %s22, %s34
      %p85 = scmp.eq.s32.totalorder %s84, 0
      %s87 = sadd.s32 %s86, 1
      %s88 = scalar_select %p85, %s86, %s87
      %p91 = pneg %p85
      %p92 = scmp.eq.s32.totalorder %s15, 1
      %p93 = por %p91, %p92
      %p94 = scmp.ne.s32.totalorder %s86, %s89
      %p95 = scmp.eq.s32.totalorder %s15, 0
      %p96 = por %p94, %p95
      %p97 = scmp.ne.s32.totalorder %s86, %s89
      %p98 = scmp.eq.s32.totalorder %s20, 1
      %p99 = por %p97, %p98
      %p100 = scmp.ne.s32.totalorder %s89, %s90
      %p101 = scmp.eq.s32.totalorder %s20, 0
      %p102 = por %p100, %p101
      %p103 = scmp.ne.s32.totalorder %s89, %s90
      %p104 = scmp.eq.s32.totalorder %s21, 1
      %p105 = por %p103, %p104
      %p107 = scmp.ne.s32.totalorder %s90, %s106
      %p108 = scmp.eq.s32.totalorder %s21, 0
      %p109 = por %p107, %p108
      %p110 = scmp.le.s32.totalorder 1, %s15
      %p111 = scmp.lt.s32.totalorder %s15, 3
      %p112 = pnand %p110, %p111
      %p113 = pneg %p112
      // Predicated region
      $region9: #{tpu_custom_call.1} parent=5 // pred_check
        _
      $region10: #{tpu_custom_call.1} parent=5 // pred_check_branch
        %115 = sbr.rel (%p112) target = $region12
      $region11: #{tpu_custom_call.1} parent=5 // pred_region
        %s116 = ssub.s32 %s15, 1
        // Predicated region
        $region13: #{tpu_custom_call.1} parent=11 // pred_check
          %p117 = pneg %p76
        $region14: #{tpu_custom_call.1} parent=11 // pred_check_branch
          %119 = sbr.rel (%p117) target = $region16
        $region15: #{tpu_custom_call.1} parent=11 // pred_region
          %s121 = ssub.s32 16, 16
          %122 = vsyncadd [#allocation7], %s121
          %s124 = sshll.u32 %s1, 4
          %s125 = int_to_ptr.vmem [resolvable:$true] %s124
          %127 = dma.vmem_to_smem %s125, 16, [#allocation8], [#allocation7]
        $region16: #{tpu_custom_call.1} parent=11 // pred_fallthru
          _
      $region12: #{tpu_custom_call.1} parent=5 // pred_fallthru
        _
      %p128 = scmp.lt.s32.totalorder %s15, 2
      // Predicated region
      $region17: #{tpu_custom_call.1} parent=5 // pred_check
        %p129 = pneg %p128
      $region18: #{tpu_custom_call.1} parent=5 // pred_check_branch
        %131 = sbr.rel (%p129) target = $region20
      $region19: #{tpu_custom_call.1} parent=5 // pred_region
        // Predicated region
        $region21: #{tpu_custom_call.1} parent=19 // pred_check
          %p132 = pneg %p49
        $region22: #{tpu_custom_call.1} parent=19 // pred_check_branch
          %134 = sbr.rel (%p132) target = $region24
        $region23: #{tpu_custom_call.1} parent=19 // pred_region
          %s135 = sand.u32 %s39, 1
          %s136 = scalar_lea.sflag [#allocation5], %s135
          %s137 = sand.u32 %s39, 1
          %s138 = smul.addr %s137, 8
          %s139 = scalar_lea.vmem [#allocation4], %s138
          %s141 = ssub.s32 128, 128
          %142 = vsyncadd %s136, %s141
          %s143 = smul.addr %s23, 2
          %s144 = smul.addr %s22, 2
          %s145 = sadd.s32 %s143, %s144
          %s146 = smul.addr %s145, 64
          %s147 = scalar_lea.hbm %s0, %s146
          %s149 = sshll.u32 %s139, 4
          %s150 = int_to_ptr.vmem [resolvable:$true] %s149
          %152 = dma.hbm_to_vmem [thread:$0]  %s147, 128, %s150, %s136
        $region24: #{tpu_custom_call.1} parent=19 // pred_fallthru
          _
      $region20: #{tpu_custom_call.1} parent=5 // pred_fallthru
        _
      %p153 = scmp.le.s32.totalorder 1, %s15
      %p154 = scmp.lt.s32.totalorder %s15, 3
      %p155 = pnand %p153, %p154
      %p156 = pneg %p155
      // Predicated region
      $region25: #{tpu_custom_call.1} parent=5 // pred_check
        _
      $region26: #{tpu_custom_call.1} parent=5 // pred_check_branch
        %158 = sbr.rel (%p155) target = $region28
      $region27: #{tpu_custom_call.1} parent=5 // pred_region
        %s159 = ssub.s32 %s15, 1
        %s160 = sand.u32 %s42, 1
        %s161 = scalar_lea.sflag [#allocation5], %s160
        %s162 = sand.u32 %s42, 1
        %s163 = smul.addr %s162, 8
        %s164 = scalar_lea.vmem [#allocation4], %s163
        // Predicated region
        $region29: #{tpu_custom_call.1} parent=27 // pred_check
          %p165 = pneg %p55
        $region30: #{tpu_custom_call.1} parent=27 // pred_check_branch
          %167 = sbr.rel (%p165) target = $region32
        $region31: #{tpu_custom_call.1} parent=27 // pred_region
          %168 = dma.done %s161, 128
        $region32: #{tpu_custom_call.1} parent=27 // pred_fallthru
          _
        // Predicated region
        $region33: #{tpu_custom_call.1} parent=27 // pred_check
          %p169 = pneg %p76
        $region34: #{tpu_custom_call.1} parent=27 // pred_check_branch
          %171 = sbr.rel (%p169) target = $region36
        $region35: #{tpu_custom_call.1} parent=27 // pred_region
          %172 = dma.done [#allocation7], 16
        $region36: #{tpu_custom_call.1} parent=27 // pred_fallthru
          _
        %173 = sfence
        %s174 = sand.u32 %s42, 1
        %s175 = scalar_lea.sflag [#allocation5], %s174
        %s176 = sand.u32 %s42, 1
        %s177 = smul.addr %s176, 8
        %s178 = scalar_lea.vmem [#allocation4], %s177
        %p179 = pneg %p55
        %p180 = pneg %p52
        %p181 = pneg %p76
        %p182 = pneg %p73
        %p183 = pneg %p102
        %p184 = pneg %p99
        %s185 = sand.u32 %s89, 1
        %s186 = scalar_lea.sflag [#allocation6], %s185
        %s187 = sand.u32 %s89, 1
        %s188 = smul.addr %s187, 8
        %s189 = scalar_lea.vmem [#allocation9], %s188
        %v190 = vld [vmem:[%s164] sm:$0xff]
        %p191 = scmp.eq.s32.totalorder %s25, 0
        // Predicated region
        $region37: #{tpu_custom_call.1} parent=27 // pred_check
          %p192 = pneg %p191
        $region38: #{tpu_custom_call.1} parent=27 // pred_check_branch
          %194 = sbr.rel (%p192) target = $region40
        $region39: #{tpu_custom_call.1} parent=27 // pred_region
          %v195 = vlaneseq
          %vm196 = vcmp.ge.s32.totalorder %v195, 0
          %vm197 = vcmp.lt.s32.totalorder %v195, 256
          %vm198 = vmand %vm196, %vm197
          %199 = vst.msk [vmem:[#allocation2] sm:$0x3] %vm198, 0.0
          %200 = vst.msk [vmem:[#allocation3] sm:$0x3] %vm198, -inf
        $region40: #{tpu_custom_call.1} parent=27 // pred_fallthru
          _
        %v201 = vld [vmem:[#allocation2] sm:$0x3]
        %v203 = vcombine.high %v190, %v190
        %vm205 = vcmask 1043456
        %v206 = vsel %vm205, %v190, 0.0
        %v207 = vrot.slane %v206, 4
        %v208 = vadd.f32 %v206, %v207
        %v209 = vrot.slane %v208, 2
        %v210 = vadd.f32 %v208, %v209
        %v211 = vrot.slane %v210, 1
        %v212 = vadd.f32 %v210, %v211
        %v213 = vsel %vm205, %v203, 0.0
        %v214 = vrot.slane %v213, 4
        %v215 = vadd.f32 %v213, %v214
        %v216 = vrot.slane %v215, 2
        %v217 = vadd.f32 %v215, %v216
        %v218 = vrot.slane %v217, 1
        %v219 = vadd.f32 %v217, %v218
        %v222 = vcombine.low %v212, %v219
        %v224 = vunpack.c.l.s4 1966171168
        %v225 = vunpack.c.0.s8 %v224
        %v226 = vlaneseq
        %v227 = vshrl.u32 %v226, 7
        %v228 = vsub.s32 %v225, %v227
        %v229 = vrot.slane %v222, %v228
        %v231 = vunpack.c.l.s4 1966171168
        %v232 = vunpack.c.0.s8 %v231
        %v233 = vlaneseq
        %v234 = vshrl.u32 %v233, 7
        %v235 = vsub.s32 %v232, %v234
        %v236 = vrot.slane %v229, %v235
        %v238 = vadd.f32 %v201, %v236
        %v239 = vlaneseq
        %vm240 = vcmp.ge.s32.totalorder %v239, 0
        %vm241 = vcmp.lt.s32.totalorder %v239, 256
        %vm242 = vmand %vm240, %vm241
        %243 = vst.msk [vmem:[#allocation2] sm:$0x3] %vm242, %v238
        %v244 = vld [vmem:[#allocation3] sm:$0x3]
        %v245 = vsel %vm205, %v190, -inf
        %v246 = vrot.slane %v245, 4
        %v247 = vmax.f32 %v245, %v246
        %v248 = vrot.slane %v247, 2
        %v249 = vmax.f32 %v247, %v248
        %v250 = vrot.slane %v249, 1
        %v251 = vmax.f32 %v249, %v250
        %v252 = vsel %vm205, %v203, -inf
        %v253 = vrot.slane %v252, 4
        %v254 = vmax.f32 %v252, %v253
        %v255 = vrot.slane %v254, 2
        %v256 = vmax.f32 %v254, %v255
        %v257 = vrot.slane %v256, 1
        %v258 = vmax.f32 %v256, %v257
        %v261 = vcombine.low %v251, %v258
        %v263 = vunpack.c.l.s4 1966171168
        %v264 = vunpack.c.0.s8 %v263
        %v265 = vlaneseq
        %v266 = vshrl.u32 %v265, 7
        %v267 = vsub.s32 %v264, %v266
        %v268 = vrot.slane %v261, %v267
        %v270 = vunpack.c.l.s4 1966171168
        %v271 = vunpack.c.0.s8 %v270
        %v272 = vlaneseq
        %v273 = vshrl.u32 %v272, 7
        %v274 = vsub.s32 %v271, %v273
        %v275 = vrot.slane %v268, %v274
        %v277 = vmax.f32 %v244, %v275
        %278 = vst.msk [vmem:[#allocation3] sm:$0x3] %vm242, %v277
        %279 = vst [vmem:[%s189] sm:$0xff] %v190
        // Predicated region
        $region41: #{tpu_custom_call.1} parent=27 // pred_check
          %p280 = pneg %p191
        $region42: #{tpu_custom_call.1} parent=27 // pred_check_branch
          %282 = sbr.rel (%p280) target = $region44
        $region43: #{tpu_custom_call.1} parent=27 // pred_region
          %v283 = vld [vmem:[#allocation2] sm:$0x3]
          %v284 = vld [vmem:[#allocation3] sm:$0x3]
          %v285 = vmul.f32 %v283, 0.25
          %v286 = vlaneseq
          %v287 = vand.u32 %v286, 127
          %v288 = vadd.s32 %v287, 128
          %vm289 = vcmp.lt.s32.totalorder %v287, 0
          %v290 = vsub.s32 0, %v287
          %v291 = vsel %vm289, %v290, %v287
          %v292 = vshrl.u32 %v291, 4
          %v293 = vand.u32 %v291, 15
          %v294 = vsub.s32 0, %v293
          %v295 = vsel %vm289, %v294, %v293
          %vm296 = vcmp.lt.s32.totalorder %v288, 0
          %v297 = vsub.s32 0, %v288
          %v298 = vsel %vm296, %v297, %v288
          %v299 = vshrl.u32 %v298, 4
          %v300 = vand.u32 %v298, 15
          %v301 = vsub.s32 0, %v300
          %v302 = vsel %vm296, %v301, %v300
          %vm303 = vcmp.ne.s32.totalorder %v295, 0
          %vm304 = vcmp.ne.s32.totalorder %v302, 0
          %vm305 = vcmp.lt.s32.totalorder %v295, 0
          %vm306 = vcmp.lt.s32.totalorder %v302, 0
          %vm307 = vmand %vm305, %vm303
          %vm308 = vmand %vm306, %vm304
          %v309 = vadd.s32 %v295, 16
          %v310 = vadd.s32 %v302, 16
          %v311 = vsel %vm307, %v309, %v295
          %v312 = vsel %vm308, %v310, %v302
          %v313 = vadd.s32 %v311, 4294967293
          %v314 = vadd.s32 %v312, 4294967293
          %vm315 = vcmp.ge.s32.totalorder %v313, 0
          %vm316 = vcmp.ge.s32.totalorder %v314, 0
          %vm317 = vcmp.lt.s32.totalorder %v313, 16
          %vm318 = vcmp.lt.s32.totalorder %v314, 16
          %vm319 = vmand %vm315, %vm317
          %vm320 = vmand %vm316, %vm318
          %v322 = vlaneseq
          %v323 = vshrl.u32 %v322, 7
          %v324 = vsub.s32 0, %v323
          %v325 = vrot.slane %v285, %v324
          %v326 = vlaneseq
          %v327 = vshrl.u32 %v326, 7
          %v328 = vsub.s32 1, %v327
          %v329 = vrot.slane %v285, %v328
          %330 = vrot.lane.b32.xlu0 %v325, 3
          %v331 = vpop.permute.xlu0 %330
          %332 = vrot.lane.b32.xlu0 %v329, 3
          %v333 = vpop.permute.xlu0 %332
          %vm334 = vcmask 23552
          %v335 = vsel %vm334, %v331, %v333
          %v339 = vsel %vm334, 0.0, %v331
          %v340 = vsel %vm334, %v333, 0.0
          %v341 = vsel %vm319, %v339, 0.0
          %v342 = vsel %vm320, %v335, 0.0
          %345 = vrot.lane.b32.xlu0 %v341, 48
          %v346 = vpop.permute.xlu0 %345
          %347 = vrot.lane.b32.xlu0 %v342, 48
          %v348 = vpop.permute.xlu0 %347
          %vm349 = vcmask 392192
          %v350 = vsel %vm349, %v346, %v348
          %v354 = vsel %vm349, 0.0, %v346
          %v355 = vsel %vm349, %v348, 0.0
          %v357 = vlaneseq
          %v358 = vshrl.u32 %v357, 7
          %v359 = vsub.s32 0, %v358
          %v360 = vrot.slane %v284, %v359
          %v361 = vlaneseq
          %v362 = vshrl.u32 %v361, 7
          %v363 = vsub.s32 1, %v362
          %v364 = vrot.slane %v284, %v363
          %365 = vrot.lane.b32.xlu0 %v360, 3
          %v366 = vpop.permute.xlu0 %365
          %367 = vrot.lane.b32.xlu0 %v364, 3
          %v368 = vpop.permute.xlu0 %367
          %v369 = vsel %vm334, %v366, %v368
          %v373 = vsel %vm334, 0.0, %v366
          %v374 = vsel %vm334, %v368, 0.0
          %v375 = vsel %vm319, %v373, 0.0
          %v376 = vsel %vm320, %v369, 0.0
          %379 = vrot.lane.b32.xlu0 %v375, 48
          %v380 = vpop.permute.xlu0 %379
          %381 = vrot.lane.b32.xlu0 %v376, 48
          %v382 = vpop.permute.xlu0 %381
          %v383 = vsel %vm349, %v380, %v382
          %v387 = vsel %vm349, 0.0, %v380
          %v388 = vsel %vm349, %v382, 0.0
          %s389 = sld [smem:[#allocation8]]
          %v390 = vstv %s389
          %v391 = vmul.f32 %v390, %v354
          %v392 = vmul.f32 %v390, %v350
          %v393 = vadd.f32 %v391, 0.0
          %v394 = vadd.f32 %v392, 0.0
          %s395 = sld [smem:[#allocation8 + $0x31]]
          %v396 = vstv %s395
          %v397 = vmul.f32 %v396, %v387
          %v398 = vmul.f32 %v396, %v383
          %v399 = vadd.f32 %v393, %v397
          %v400 = vadd.f32 %v394, %v398
          %s401 = sld [smem:[#allocation8 + $0x7]]
          %v402 = vstv %s401
          %v403 = vmul.f32 %v402, %v354
          %v404 = vmul.f32 %v402, %v350
          %v405 = vmul.f32 %v402, %v355
          %v406 = vadd.f32 %v403, 0.0
          %v407 = vadd.f32 %v404, 0.0
          %v408 = vadd.f32 %v405, 0.0
          %s409 = sld [smem:[#allocation8 + $0x38]]
          %v410 = vstv %s409
          %v411 = vmul.f32 %v410, %v387
          %v412 = vmul.f32 %v410, %v383
          %v413 = vmul.f32 %v410, %v388
          %v414 = vadd.f32 %v406, %v411
          %v415 = vadd.f32 %v407, %v412
          %v416 = vadd.f32 %v408, %v413
          %s417 = sld [smem:[#allocation8 + $0xe]]
          %v418 = vstv %s417
          %v419 = vmul.f32 %v418, %v354
          %v420 = vmul.f32 %v418, %v350
          %v421 = vmul.f32 %v418, %v355
          %v422 = vadd.f32 %v419, 0.0
          %v423 = vadd.f32 %v420, 0.0
          %v424 = vadd.f32 %v421, 0.0
          %s425 = sld [smem:[#allocation8 + $0x3f]]
          %v426 = vstv %s425
          %v427 = vmul.f32 %v426, %v387
          %v428 = vmul.f32 %v426, %v383
          %v429 = vmul.f32 %v426, %v388
          %v430 = vadd.f32 %v422, %v427
          %v431 = vadd.f32 %v423, %v428
          %v432 = vadd.f32 %v424, %v429
          %s433 = sld [smem:[#allocation8 + $0x15]]
          %v434 = vstv %s433
          %v435 = vmul.f32 %v434, %v354
          %v436 = vmul.f32 %v434, %v350
          %v437 = vmul.f32 %v434, %v355
          %v438 = vadd.f32 %v435, 0.0
          %v439 = vadd.f32 %v436, 0.0
          %v440 = vadd.f32 %v437, 0.0
          %s441 = sld [smem:[#allocation8 + $0x46]]
          %v442 = vstv %s441
          %v443 = vmul.f32 %v442, %v387
          %v444 = vmul.f32 %v442, %v383
          %v445 = vmul.f32 %v442, %v388
          %v446 = vadd.f32 %v438, %v443
          %v447 = vadd.f32 %v439, %v444
          %v448 = vadd.f32 %v440, %v445
          %s449 = sld [smem:[#allocation8 + $0x1c]]
          %v450 = vstv %s449
          %v451 = vmul.f32 %v450, %v354
          %v452 = vmul.f32 %v450, %v350
          %v453 = vmul.f32 %v450, %v355
          %v454 = vadd.f32 %v451, 0.0
          %v455 = vadd.f32 %v452, 0.0
          %v456 = vadd.f32 %v453, 0.0
          %s457 = sld [smem:[#allocation8 + $0x4d]]
          %v458 = vstv %s457
          %v459 = vmul.f32 %v458, %v387
          %v460 = vmul.f32 %v458, %v383
          %v461 = vmul.f32 %v458, %v388
          %v462 = vadd.f32 %v454, %v459
          %v463 = vadd.f32 %v455, %v460
          %v464 = vadd.f32 %v456, %v461
          %s465 = sld [smem:[#allocation8 + $0x23]]
          %v466 = vstv %s465
          %v467 = vmul.f32 %v466, %v354
          %v468 = vmul.f32 %v466, %v350
          %v469 = vmul.f32 %v466, %v355
          %v470 = vadd.f32 %v467, 0.0
          %v471 = vadd.f32 %v468, 0.0
          %v472 = vadd.f32 %v469, 0.0
          %s473 = sld [smem:[#allocation8 + $0x54]]
          %v474 = vstv %s473
          %v475 = vmul.f32 %v474, %v387
          %v476 = vmul.f32 %v474, %v383
          %v477 = vmul.f32 %v474, %v388
          %v478 = vadd.f32 %v470, %v475
          %v479 = vadd.f32 %v471, %v476
          %v480 = vadd.f32 %v472, %v477
          %s481 = sld [smem:[#allocation8 + $0x2a]]
          %v482 = vstv %s481
          %v483 = vmul.f32 %v482, %v354
          %v484 = vmul.f32 %v482, %v350
          %v485 = vmul.f32 %v482, %v355
          %v486 = vadd.f32 %v483, 0.0
          %v487 = vadd.f32 %v484, 0.0
          %v488 = vadd.f32 %v485, 0.0
          %s489 = sld [smem:[#allocation8 + $0x5b]]
          %v490 = vstv %s489
          %v491 = vmul.f32 %v490, %v387
          %v492 = vmul.f32 %v490, %v383
          %v493 = vmul.f32 %v490, %v388
          %v494 = vadd.f32 %v486, %v491
          %v495 = vadd.f32 %v487, %v492
          %v496 = vadd.f32 %v488, %v493
          %v497 = vadd.s32 %v311, 4294967294
          %v498 = vadd.s32 %v312, 4294967294
          %vm499 = vcmp.ge.s32.totalorder %v497, 0
          %vm500 = vcmp.ge.s32.totalorder %v498, 0
          %vm501 = vcmp.lt.s32.totalorder %v497, 16
          %vm502 = vcmp.lt.s32.totalorder %v498, 16
          %vm503 = vmand %vm499, %vm501
          %vm504 = vmand %vm500, %vm502
          %507 = vrot.lane.b32.xlu0 %v339, 127
          %v508 = vpop.permute.xlu0 %507
          %509 = vrot.lane.b32.xlu0 %v335, 127
          %v510 = vpop.permute.xlu0 %509
          %511 = vrot.lane.b32.xlu0 %v340, 127
          %v512 = vpop.permute.xlu0 %511
          %vm513 = vcmask 1039360
          %v514 = vsel %vm513, %v508, %v510
          %v515 = vsel %vm513, %v510, %v512
          %v518 = vsel %vm503, %v514, 0.0
          %v519 = vsel %vm504, %v515, 0.0
          %522 = vrot.lane.b32.xlu0 %v518, 48
          %v523 = vpop.permute.xlu0 %522
          %524 = vrot.lane.b32.xlu0 %v519, 48
          %v525 = vpop.permute.xlu0 %524
          %v526 = vsel %vm349, %v523, %v525
          %v530 = vsel %vm349, 0.0, %v523
          %v531 = vsel %vm349, %v525, 0.0
          %534 = vrot.lane.b32.xlu0 %v373, 127
          %v535 = vpop.permute.xlu0 %534
          %536 = vrot.lane.b32.xlu0 %v369, 127
          %v537 = vpop.permute.xlu0 %536
          %538 = vrot.lane.b32.xlu0 %v374, 127
          %v539 = vpop.permute.xlu0 %538
          %v540 = vsel %vm513, %v535, %v537
          %v541 = vsel %vm513, %v537, %v539
          %v544 = vsel %vm503, %v540, 0.0
          %v545 = vsel %vm504, %v541, 0.0
          %548 = vrot.lane.b32.xlu0 %v544, 48
          %v549 = vpop.permute.xlu0 %548
          %550 = vrot.lane.b32.xlu0 %v545, 48
          %v551 = vpop.permute.xlu0 %550
          %v552 = vsel %vm349, %v549, %v551
          %v556 = vsel %vm349, 0.0, %v549
          %v557 = vsel %vm349, %v551, 0.0
          %s558 = sld [smem:[#allocation8 + $0x1]]
          %v559 = vstv %s558
          %v560 = vmul.f32 %v559, %v530
          %v561 = vmul.f32 %v559, %v526
          %v562 = vadd.f32 %v399, %v560
          %v563 = vadd.f32 %v400, %v561
          %s564 = sld [smem:[#allocation8 + $0x32]]
          %v565 = vstv %s564
          %v566 = vmul.f32 %v565, %v556
          %v567 = vmul.f32 %v565, %v552
          %v568 = vadd.f32 %v562, %v566
          %v569 = vadd.f32 %v563, %v567
          %s570 = sld [smem:[#allocation8 + $0x8]]
          %v571 = vstv %s570
          %v572 = vmul.f32 %v571, %v530
          %v573 = vmul.f32 %v571, %v526
          %v574 = vmul.f32 %v571, %v531
          %v575 = vadd.f32 %v414, %v572
          %v576 = vadd.f32 %v415, %v573
          %v577 = vadd.f32 %v416, %v574
          %s578 = sld [smem:[#allocation8 + $0x39]]
          %v579 = vstv %s578
          %v580 = vmul.f32 %v579, %v556
          %v581 = vmul.f32 %v579, %v552
          %v582 = vmul.f32 %v579, %v557
          %v583 = vadd.f32 %v575, %v580
          %v584 = vadd.f32 %v576, %v581
          %v585 = vadd.f32 %v577, %v582
          %s586 = sld [smem:[#allocation8 + $0xf]]
          %v587 = vstv %s586
          %v588 = vmul.f32 %v587, %v530
          %v589 = vmul.f32 %v587, %v526
          %v590 = vmul.f32 %v587, %v531
          %v591 = vadd.f32 %v430, %v588
          %v592 = vadd.f32 %v431, %v589
          %v593 = vadd.f32 %v432, %v590
          %s594 = sld [smem:[#allocation8 + $0x40]]
          %v595 = vstv %s594
          %v596 = vmul.f32 %v595, %v556
          %v597 = vmul.f32 %v595, %v552
          %v598 = vmul.f32 %v595, %v557
          %v599 = vadd.f32 %v591, %v596
          %v600 = vadd.f32 %v592, %v597
          %v601 = vadd.f32 %v593, %v598
          %s602 = sld [smem:[#allocation8 + $0x16]]
          %v603 = vstv %s602
          %v604 = vmul.f32 %v603, %v530
          %v605 = vmul.f32 %v603, %v526
          %v606 = vmul.f32 %v603, %v531
          %v607 = vadd.f32 %v446, %v604
          %v608 = vadd.f32 %v447, %v605
          %v609 = vadd.f32 %v448, %v606
          %s610 = sld [smem:[#allocation8 + $0x47]]
          %v611 = vstv %s610
          %v612 = vmul.f32 %v611, %v556
          %v613 = vmul.f32 %v611, %v552
          %v614 = vmul.f32 %v611, %v557
          %v615 = vadd.f32 %v607, %v612
          %v616 = vadd.f32 %v608, %v613
          %v617 = vadd.f32 %v609, %v614
          %s618 = sld [smem:[#allocation8 + $0x1d]]
          %v619 = vstv %s618
          %v620 = vmul.f32 %v619, %v530
          %v621 = vmul.f32 %v619, %v526
          %v622 = vmul.f32 %v619, %v531
          %v623 = vadd.f32 %v462, %v620
          %v624 = vadd.f32 %v463, %v621
          %v625 = vadd.f32 %v464, %v622
          %s626 = sld [smem:[#allocation8 + $0x4e]]
          %v627 = vstv %s626
          %v628 = vmul.f32 %v627, %v556
          %v629 = vmul.f32 %v627, %v552
          %v630 = vmul.f32 %v627, %v557
          %v631 = vadd.f32 %v623, %v628
          %v632 = vadd.f32 %v624, %v629
          %v633 = vadd.f32 %v625, %v630
          %s634 = sld [smem:[#allocation8 + $0x24]]
          %v635 = vstv %s634
          %v636 = vmul.f32 %v635, %v530
          %v637 = vmul.f32 %v635, %v526
          %v638 = vmul.f32 %v635, %v531
          %v639 = vadd.f32 %v478, %v636
          %v640 = vadd.f32 %v479, %v637
          %v641 = vadd.f32 %v480, %v638
          %s642 = sld [smem:[#allocation8 + $0x55]]
          %v643 = vstv %s642
          %v644 = vmul.f32 %v643, %v556
          %v645 = vmul.f32 %v643, %v552
          %v646 = vmul.f32 %v643, %v557
          %v647 = vadd.f32 %v639, %v644
          %v648 = vadd.f32 %v640, %v645
          %v649 = vadd.f32 %v641, %v646
          %s650 = sld [smem:[#allocation8 + $0x2b]]
          %v651 = vstv %s650
          %v652 = vmul.f32 %v651, %v530
          %v653 = vmul.f32 %v651, %v526
          %v654 = vmul.f32 %v651, %v531
          %v655 = vadd.f32 %v494, %v652
          %v656 = vadd.f32 %v495, %v653
          %v657 = vadd.f32 %v496, %v654
          %s658 = sld [smem:[#allocation8 + $0x5c]]
          %v659 = vstv %s658
          %v660 = vmul.f32 %v659, %v556
          %v661 = vmul.f32 %v659, %v552
          %v662 = vmul.f32 %v659, %v557
          %v663 = vadd.f32 %v655, %v660
          %v664 = vadd.f32 %v656, %v661
          %v665 = vadd.f32 %v657, %v662
          %v666 = vadd.s32 %v311, 4294967295
          %v667 = vadd.s32 %v312, 4294967295
          %vm668 = vcmp.ge.s32.totalorder %v666, 0
          %vm669 = vcmp.ge.s32.totalorder %v667, 0
          %vm670 = vcmp.lt.s32.totalorder %v666, 16
          %vm671 = vcmp.lt.s32.totalorder %v667, 16
          %vm672 = vmand %vm668, %vm670
          %vm673 = vmand %vm669, %vm671
          %674 = vrot.lane.b32.xlu0 %v339, 126
          %v675 = vpop.permute.xlu0 %674
          %676 = vrot.lane.b32.xlu0 %v335, 126
          %v677 = vpop.permute.xlu0 %676
          %678 = vrot.lane.b32.xlu0 %v340, 126
          %v679 = vpop.permute.xlu0 %678
          %vm680 = vcmask 1031168
          %v681 = vsel %vm680, %v675, %v677
          %v682 = vsel %vm680, %v677, %v679
          %v685 = vsel %vm672, %v681, 0.0
          %v686 = vsel %vm673, %v682, 0.0
          %689 = vrot.lane.b32.xlu0 %v685, 48
          %v690 = vpop.permute.xlu0 %689
          %691 = vrot.lane.b32.xlu0 %v686, 48
          %v692 = vpop.permute.xlu0 %691
          %v693 = vsel %vm349, %v690, %v692
          %v697 = vsel %vm349, 0.0, %v690
          %v698 = vsel %vm349, %v692, 0.0
          %699 = vrot.lane.b32.xlu0 %v373, 126
          %v700 = vpop.permute.xlu0 %699
          %701 = vrot.lane.b32.xlu0 %v369, 126
          %v702 = vpop.permute.xlu0 %701
          %703 = vrot.lane.b32.xlu0 %v374, 126
          %v704 = vpop.permute.xlu0 %703
          %v705 = vsel %vm680, %v700, %v702
          %v706 = vsel %vm680, %v702, %v704
          %v709 = vsel %vm672, %v705, 0.0
          %v710 = vsel %vm673, %v706, 0.0
          %713 = vrot.lane.b32.xlu0 %v709, 48
          %v714 = vpop.permute.xlu0 %713
          %715 = vrot.lane.b32.xlu0 %v710, 48
          %v716 = vpop.permute.xlu0 %715
          %v717 = vsel %vm349, %v714, %v716
          %v721 = vsel %vm349, 0.0, %v714
          %v722 = vsel %vm349, %v716, 0.0
          %s723 = sld [smem:[#allocation8 + $0x2]]
          %v724 = vstv %s723
          %v725 = vmul.f32 %v724, %v697
          %v726 = vmul.f32 %v724, %v693
          %v727 = vadd.f32 %v568, %v725
          %v728 = vadd.f32 %v569, %v726
          %s729 = sld [smem:[#allocation8 + $0x33]]
          %v730 = vstv %s729
          %v731 = vmul.f32 %v730, %v721
          %v732 = vmul.f32 %v730, %v717
          %v733 = vadd.f32 %v727, %v731
          %v734 = vadd.f32 %v728, %v732
          %s735 = sld [smem:[#allocation8 + $0x9]]
          %v736 = vstv %s735
          %v737 = vmul.f32 %v736, %v697
          %v738 = vmul.f32 %v736, %v693
          %v739 = vmul.f32 %v736, %v698
          %v740 = vadd.f32 %v583, %v737
          %v741 = vadd.f32 %v584, %v738
          %v742 = vadd.f32 %v585, %v739
          %s743 = sld [smem:[#allocation8 + $0x3a]]
          %v744 = vstv %s743
          %v745 = vmul.f32 %v744, %v721
          %v746 = vmul.f32 %v744, %v717
          %v747 = vmul.f32 %v744, %v722
          %v748 = vadd.f32 %v740, %v745
          %v749 = vadd.f32 %v741, %v746
          %v750 = vadd.f32 %v742, %v747
          %s751 = sld [smem:[#allocation8 + $0x10]]
          %v752 = vstv %s751
          %v753 = vmul.f32 %v752, %v697
          %v754 = vmul.f32 %v752, %v693
          %v755 = vmul.f32 %v752, %v698
          %v756 = vadd.f32 %v599, %v753
          %v757 = vadd.f32 %v600, %v754
          %v758 = vadd.f32 %v601, %v755
          %s759 = sld [smem:[#allocation8 + $0x41]]
          %v760 = vstv %s759
          %v761 = vmul.f32 %v760, %v721
          %v762 = vmul.f32 %v760, %v717
          %v763 = vmul.f32 %v760, %v722
          %v764 = vadd.f32 %v756, %v761
          %v765 = vadd.f32 %v757, %v762
          %v766 = vadd.f32 %v758, %v763
          %s767 = sld [smem:[#allocation8 + $0x17]]
          %v768 = vstv %s767
          %v769 = vmul.f32 %v768, %v697
          %v770 = vmul.f32 %v768, %v693
          %v771 = vmul.f32 %v768, %v698
          %v772 = vadd.f32 %v615, %v769
          %v773 = vadd.f32 %v616, %v770
          %v774 = vadd.f32 %v617, %v771
          %s775 = sld [smem:[#allocation8 + $0x48]]
          %v776 = vstv %s775
          %v777 = vmul.f32 %v776, %v721
          %v778 = vmul.f32 %v776, %v717
          %v779 = vmul.f32 %v776, %v722
          %v780 = vadd.f32 %v772, %v777
          %v781 = vadd.f32 %v773, %v778
          %v782 = vadd.f32 %v774, %v779
          %s783 = sld [smem:[#allocation8 + $0x1e]]
          %v784 = vstv %s783
          %v785 = vmul.f32 %v784, %v697
          %v786 = vmul.f32 %v784, %v693
          %v787 = vmul.f32 %v784, %v698
          %v788 = vadd.f32 %v631, %v785
          %v789 = vadd.f32 %v632, %v786
          %v790 = vadd.f32 %v633, %v787
          %s791 = sld [smem:[#allocation8 + $0x4f]]
          %v792 = vstv %s791
          %v793 = vmul.f32 %v792, %v721
          %v794 = vmul.f32 %v792, %v717
          %v795 = vmul.f32 %v792, %v722
          %v796 = vadd.f32 %v788, %v793
          %v797 = vadd.f32 %v789, %v794
          %v798 = vadd.f32 %v790, %v795
          %s799 = sld [smem:[#allocation8 + $0x25]]
          %v800 = vstv %s799
          %v801 = vmul.f32 %v800, %v697
          %v802 = vmul.f32 %v800, %v693
          %v803 = vmul.f32 %v800, %v698
          %v804 = vadd.f32 %v647, %v801
          %v805 = vadd.f32 %v648, %v802
          %v806 = vadd.f32 %v649, %v803
          %s807 = sld [smem:[#allocation8 + $0x56]]
          %v808 = vstv %s807
          %v809 = vmul.f32 %v808, %v721
          %v810 = vmul.f32 %v808, %v717
          %v811 = vmul.f32 %v808, %v722
          %v812 = vadd.f32 %v804, %v809
          %v813 = vadd.f32 %v805, %v810
          %v814 = vadd.f32 %v806, %v811
          %s815 = sld [smem:[#allocation8 + $0x2c]]
          %v816 = vstv %s815
          %v817 = vmul.f32 %v816, %v697
          %v818 = vmul.f32 %v816, %v693
          %v819 = vmul.f32 %v816, %v698
          %v820 = vadd.f32 %v663, %v817
          %v821 = vadd.f32 %v664, %v818
          %v822 = vadd.f32 %v665, %v819
          %s823 = sld [smem:[#allocation8 + $0x5d]]
          %v824 = vstv %s823
          %v825 = vmul.f32 %v824, %v721
          %v826 = vmul.f32 %v824, %v717
          %v827 = vmul.f32 %v824, %v722
          %v828 = vadd.f32 %v820, %v825
          %v829 = vadd.f32 %v821, %v826
          %v830 = vadd.f32 %v822, %v827
          %vm831 = vcmp.ge.s32.totalorder %v311, 0
          %vm832 = vcmp.ge.s32.totalorder %v312, 0
          %vm833 = vcmp.lt.s32.totalorder %v311, 16
          %vm834 = vcmp.lt.s32.totalorder %v312, 16
          %vm835 = vmand %vm831, %vm833
          %vm836 = vmand %vm832, %vm834
          %837 = vrot.lane.b32.xlu0 %v339, 125
          %v838 = vpop.permute.xlu0 %837
          %839 = vrot.lane.b32.xlu0 %v335, 125
          %v840 = vpop.permute.xlu0 %839
          %841 = vrot.lane.b32.xlu0 %v340, 125
          %v842 = vpop.permute.xlu0 %841
          %vm843 = vcmask 1022976
          %v844 = vsel %vm843, %v838, %v840
          %v845 = vsel %vm843, %v840, %v842
          %v848 = vsel %vm835, %v844, 0.0
          %v849 = vsel %vm836, %v845, 0.0
          %852 = vrot.lane.b32.xlu0 %v848, 48
          %v853 = vpop.permute.xlu0 %852
          %854 = vrot.lane.b32.xlu0 %v849, 48
          %v855 = vpop.permute.xlu0 %854
          %v856 = vsel %vm349, %v853, %v855
          %v860 = vsel %vm349, 0.0, %v853
          %v861 = vsel %vm349, %v855, 0.0
          %862 = vrot.lane.b32.xlu0 %v373, 125
          %v863 = vpop.permute.xlu0 %862
          %864 = vrot.lane.b32.xlu0 %v369, 125
          %v865 = vpop.permute.xlu0 %864
          %866 = vrot.lane.b32.xlu0 %v374, 125
          %v867 = vpop.permute.xlu0 %866
          %v868 = vsel %vm843, %v863, %v865
          %v869 = vsel %vm843, %v865, %v867
          %v872 = vsel %vm835, %v868, 0.0
          %v873 = vsel %vm836, %v869, 0.0
          %876 = vrot.lane.b32.xlu0 %v872, 48
          %v877 = vpop.permute.xlu0 %876
          %878 = vrot.lane.b32.xlu0 %v873, 48
          %v879 = vpop.permute.xlu0 %878
          %v880 = vsel %vm349, %v877, %v879
          %v884 = vsel %vm349, 0.0, %v877
          %v885 = vsel %vm349, %v879, 0.0
          %s886 = sld [smem:[#allocation8 + $0x3]]
          %v887 = vstv %s886
          %v888 = vmul.f32 %v887, %v860
          %v889 = vmul.f32 %v887, %v856
          %v890 = vadd.f32 %v733, %v888
          %v891 = vadd.f32 %v734, %v889
          %s892 = sld [smem:[#allocation8 + $0x34]]
          %v893 = vstv %s892
          %v894 = vmul.f32 %v893, %v884
          %v895 = vmul.f32 %v893, %v880
          %v896 = vadd.f32 %v890, %v894
          %v897 = vadd.f32 %v891, %v895
          %s898 = sld [smem:[#allocation8 + $0xa]]
          %v899 = vstv %s898
          %v900 = vmul.f32 %v899, %v860
          %v901 = vmul.f32 %v899, %v856
          %v902 = vmul.f32 %v899, %v861
          %v903 = vadd.f32 %v748, %v900
          %v904 = vadd.f32 %v749, %v901
          %v905 = vadd.f32 %v750, %v902
          %s906 = sld [smem:[#allocation8 + $0x3b]]
          %v907 = vstv %s906
          %v908 = vmul.f32 %v907, %v884
          %v909 = vmul.f32 %v907, %v880
          %v910 = vmul.f32 %v907, %v885
          %v911 = vadd.f32 %v903, %v908
          %v912 = vadd.f32 %v904, %v909
          %v913 = vadd.f32 %v905, %v910
          %s914 = sld [smem:[#allocation8 + $0x11]]
          %v915 = vstv %s914
          %v916 = vmul.f32 %v915, %v860
          %v917 = vmul.f32 %v915, %v856
          %v918 = vmul.f32 %v915, %v861
          %v919 = vadd.f32 %v764, %v916
          %v920 = vadd.f32 %v765, %v917
          %v921 = vadd.f32 %v766, %v918
          %s922 = sld [smem:[#allocation8 + $0x42]]
          %v923 = vstv %s922
          %v924 = vmul.f32 %v923, %v884
          %v925 = vmul.f32 %v923, %v880
          %v926 = vmul.f32 %v923, %v885
          %v927 = vadd.f32 %v919, %v924
          %v928 = vadd.f32 %v920, %v925
          %v929 = vadd.f32 %v921, %v926
          %s930 = sld [smem:[#allocation8 + $0x18]]
          %v931 = vstv %s930
          %v932 = vmul.f32 %v931, %v860
          %v933 = vmul.f32 %v931, %v856
          %v934 = vmul.f32 %v931, %v861
          %v935 = vadd.f32 %v780, %v932
          %v936 = vadd.f32 %v781, %v933
          %v937 = vadd.f32 %v782, %v934
          %s938 = sld [smem:[#allocation8 + $0x49]]
          %v939 = vstv %s938
          %v940 = vmul.f32 %v939, %v884
          %v941 = vmul.f32 %v939, %v880
          %v942 = vmul.f32 %v939, %v885
          %v943 = vadd.f32 %v935, %v940
          %v944 = vadd.f32 %v936, %v941
          %v945 = vadd.f32 %v937, %v942
          %s946 = sld [smem:[#allocation8 + $0x1f]]
          %v947 = vstv %s946
          %v948 = vmul.f32 %v947, %v860
          %v949 = vmul.f32 %v947, %v856
          %v950 = vmul.f32 %v947, %v861
          %v951 = vadd.f32 %v796, %v948
          %v952 = vadd.f32 %v797, %v949
          %v953 = vadd.f32 %v798, %v950
          %s954 = sld [smem:[#allocation8 + $0x50]]
          %v955 = vstv %s954
          %v956 = vmul.f32 %v955, %v884
          %v957 = vmul.f32 %v955, %v880
          %v958 = vmul.f32 %v955, %v885
          %v959 = vadd.f32 %v951, %v956
          %v960 = vadd.f32 %v952, %v957
          %v961 = vadd.f32 %v953, %v958
          %s962 = sld [smem:[#allocation8 + $0x26]]
          %v963 = vstv %s962
          %v964 = vmul.f32 %v963, %v860
          %v965 = vmul.f32 %v963, %v856
          %v966 = vmul.f32 %v963, %v861
          %v967 = vadd.f32 %v812, %v964
          %v968 = vadd.f32 %v813, %v965
          %v969 = vadd.f32 %v814, %v966
          %s970 = sld [smem:[#allocation8 + $0x57]]
          %v971 = vstv %s970
          %v972 = vmul.f32 %v971, %v884
          %v973 = vmul.f32 %v971, %v880
          %v974 = vmul.f32 %v971, %v885
          %v975 = vadd.f32 %v967, %v972
          %v976 = vadd.f32 %v968, %v973
          %v977 = vadd.f32 %v969, %v974
          %s978 = sld [smem:[#allocation8 + $0x2d]]
          %v979 = vstv %s978
          %v980 = vmul.f32 %v979, %v860
          %v981 = vmul.f32 %v979, %v856
          %v982 = vmul.f32 %v979, %v861
          %v983 = vadd.f32 %v828, %v980
          %v984 = vadd.f32 %v829, %v981
          %v985 = vadd.f32 %v830, %v982
          %s986 = sld [smem:[#allocation8 + $0x5e]]
          %v987 = vstv %s986
          %v988 = vmul.f32 %v987, %v884
          %v989 = vmul.f32 %v987, %v880
          %v990 = vmul.f32 %v987, %v885
          %v991 = vadd.f32 %v983, %v988
          %v992 = vadd.f32 %v984, %v989
          %v993 = vadd.f32 %v985, %v990
          %v994 = vadd.s32 %v311, 1
          %v995 = vadd.s32 %v312, 1
          %vm996 = vcmp.ge.s32.totalorder %v994, 0
          %vm997 = vcmp.ge.s32.totalorder %v995, 0
          %vm998 = vcmp.lt.s32.totalorder %v994, 16
          %vm999 = vcmp.lt.s32.totalorder %v995, 16
          %vm1000 = vmand %vm996, %vm998
          %vm1001 = vmand %vm997, %vm999
          %1002 = vrot.lane.b32.xlu0 %v339, 124
          %v1003 = vpop.permute.xlu0 %1002
          %1004 = vrot.lane.b32.xlu0 %v335, 124
          %v1005 = vpop.permute.xlu0 %1004
          %1006 = vrot.lane.b32.xlu0 %v340, 124
          %v1007 = vpop.permute.xlu0 %1006
          %vm1008 = vcmask 1014784
          %v1009 = vsel %vm1008, %v1003, %v1005
          %v1010 = vsel %vm1008, %v1005, %v1007
          %v1013 = vsel %vm1000, %v1009, 0.0
          %v1014 = vsel %vm1001, %v1010, 0.0
          %1017 = vrot.lane.b32.xlu0 %v1013, 48
          %v1018 = vpop.permute.xlu0 %1017
          %1019 = vrot.lane.b32.xlu0 %v1014, 48
          %v1020 = vpop.permute.xlu0 %1019
          %v1021 = vsel %vm349, %v1018, %v1020
          %v1025 = vsel %vm349, 0.0, %v1018
          %v1026 = vsel %vm349, %v1020, 0.0
          %1027 = vrot.lane.b32.xlu0 %v373, 124
          %v1028 = vpop.permute.xlu0 %1027
          %1029 = vrot.lane.b32.xlu0 %v369, 124
          %v1030 = vpop.permute.xlu0 %1029
          %1031 = vrot.lane.b32.xlu0 %v374, 124
          %v1032 = vpop.permute.xlu0 %1031
          %v1033 = vsel %vm1008, %v1028, %v1030
          %v1034 = vsel %vm1008, %v1030, %v1032
          %v1037 = vsel %vm1000, %v1033, 0.0
          %v1038 = vsel %vm1001, %v1034, 0.0
          %1041 = vrot.lane.b32.xlu0 %v1037, 48
          %v1042 = vpop.permute.xlu0 %1041
          %1043 = vrot.lane.b32.xlu0 %v1038, 48
          %v1044 = vpop.permute.xlu0 %1043
          %v1045 = vsel %vm349, %v1042, %v1044
          %v1049 = vsel %vm349, 0.0, %v1042
          %v1050 = vsel %vm349, %v1044, 0.0
          %s1051 = sld [smem:[#allocation8 + $0x4]]
          %v1052 = vstv %s1051
          %v1053 = vmul.f32 %v1052, %v1025
          %v1054 = vmul.f32 %v1052, %v1021
          %v1055 = vadd.f32 %v896, %v1053
          %v1056 = vadd.f32 %v897, %v1054
          %s1057 = sld [smem:[#allocation8 + $0x35]]
          %v1058 = vstv %s1057
          %v1059 = vmul.f32 %v1058, %v1049
          %v1060 = vmul.f32 %v1058, %v1045
          %v1061 = vadd.f32 %v1055, %v1059
          %v1062 = vadd.f32 %v1056, %v1060
          %s1063 = sld [smem:[#allocation8 + $0xb]]
          %v1064 = vstv %s1063
          %v1065 = vmul.f32 %v1064, %v1025
          %v1066 = vmul.f32 %v1064, %v1021
          %v1067 = vmul.f32 %v1064, %v1026
          %v1068 = vadd.f32 %v911, %v1065
          %v1069 = vadd.f32 %v912, %v1066
          %v1070 = vadd.f32 %v913, %v1067
          %s1071 = sld [smem:[#allocation8 + $0x3c]]
          %v1072 = vstv %s1071
          %v1073 = vmul.f32 %v1072, %v1049
          %v1074 = vmul.f32 %v1072, %v1045
          %v1075 = vmul.f32 %v1072, %v1050
          %v1076 = vadd.f32 %v1068, %v1073
          %v1077 = vadd.f32 %v1069, %v1074
          %v1078 = vadd.f32 %v1070, %v1075
          %s1079 = sld [smem:[#allocation8 + $0x12]]
          %v1080 = vstv %s1079
          %v1081 = vmul.f32 %v1080, %v1025
          %v1082 = vmul.f32 %v1080, %v1021
          %v1083 = vmul.f32 %v1080, %v1026
          %v1084 = vadd.f32 %v927, %v1081
          %v1085 = vadd.f32 %v928, %v1082
          %v1086 = vadd.f32 %v929, %v1083
          %s1087 = sld [smem:[#allocation8 + $0x43]]
          %v1088 = vstv %s1087
          %v1089 = vmul.f32 %v1088, %v1049
          %v1090 = vmul.f32 %v1088, %v1045
          %v1091 = vmul.f32 %v1088, %v1050
          %v1092 = vadd.f32 %v1084, %v1089
          %v1093 = vadd.f32 %v1085, %v1090
          %v1094 = vadd.f32 %v1086, %v1091
          %s1095 = sld [smem:[#allocation8 + $0x19]]
          %v1096 = vstv %s1095
          %v1097 = vmul.f32 %v1096, %v1025
          %v1098 = vmul.f32 %v1096, %v1021
          %v1099 = vmul.f32 %v1096, %v1026
          %v1100 = vadd.f32 %v943, %v1097
          %v1101 = vadd.f32 %v944, %v1098
          %v1102 = vadd.f32 %v945, %v1099
          %s1103 = sld [smem:[#allocation8 + $0x4a]]
          %v1104 = vstv %s1103
          %v1105 = vmul.f32 %v1104, %v1049
          %v1106 = vmul.f32 %v1104, %v1045
          %v1107 = vmul.f32 %v1104, %v1050
          %v1108 = vadd.f32 %v1100, %v1105
          %v1109 = vadd.f32 %v1101, %v1106
          %v1110 = vadd.f32 %v1102, %v1107
          %s1111 = sld [smem:[#allocation8 + $0x20]]
          %v1112 = vstv %s1111
          %v1113 = vmul.f32 %v1112, %v1025
          %v1114 = vmul.f32 %v1112, %v1021
          %v1115 = vmul.f32 %v1112, %v1026
          %v1116 = vadd.f32 %v959, %v1113
          %v1117 = vadd.f32 %v960, %v1114
          %v1118 = vadd.f32 %v961, %v1115
          %s1119 = sld [smem:[#allocation8 + $0x51]]
          %v1120 = vstv %s1119
          %v1121 = vmul.f32 %v1120, %v1049
          %v1122 = vmul.f32 %v1120, %v1045
          %v1123 = vmul.f32 %v1120, %v1050
          %v1124 = vadd.f32 %v1116, %v1121
          %v1125 = vadd.f32 %v1117, %v1122
          %v1126 = vadd.f32 %v1118, %v1123
          %s1127 = sld [smem:[#allocation8 + $0x27]]
          %v1128 = vstv %s1127
          %v1129 = vmul.f32 %v1128, %v1025
          %v1130 = vmul.f32 %v1128, %v1021
          %v1131 = vmul.f32 %v1128, %v1026
          %v1132 = vadd.f32 %v975, %v1129
          %v1133 = vadd.f32 %v976, %v1130
          %v1134 = vadd.f32 %v977, %v1131
          %s1135 = sld [smem:[#allocation8 + $0x58]]
          %v1136 = vstv %s1135
          %v1137 = vmul.f32 %v1136, %v1049
          %v1138 = vmul.f32 %v1136, %v1045
          %v1139 = vmul.f32 %v1136, %v1050
          %v1140 = vadd.f32 %v1132, %v1137
          %v1141 = vadd.f32 %v1133, %v1138
          %v1142 = vadd.f32 %v1134, %v1139
          %s1143 = sld [smem:[#allocation8 + $0x2e]]
          %v1144 = vstv %s1143
          %v1145 = vmul.f32 %v1144, %v1025
          %v1146 = vmul.f32 %v1144, %v1021
          %v1147 = vmul.f32 %v1144, %v1026
          %v1148 = vadd.f32 %v991, %v1145
          %v1149 = vadd.f32 %v992, %v1146
          %v1150 = vadd.f32 %v993, %v1147
          %s1151 = sld [smem:[#allocation8 + $0x5f]]
          %v1152 = vstv %s1151
          %v1153 = vmul.f32 %v1152, %v1049
          %v1154 = vmul.f32 %v1152, %v1045
          %v1155 = vmul.f32 %v1152, %v1050
          %v1156 = vadd.f32 %v1148, %v1153
          %v1157 = vadd.f32 %v1149, %v1154
          %v1158 = vadd.f32 %v1150, %v1155
          %v1159 = vadd.s32 %v311, 2
          %v1160 = vadd.s32 %v312, 2
          %vm1161 = vcmp.ge.s32.totalorder %v1159, 0
          %vm1162 = vcmp.ge.s32.totalorder %v1160, 0
          %vm1163 = vcmp.lt.s32.totalorder %v1159, 16
          %vm1164 = vcmp.lt.s32.totalorder %v1160, 16
          %vm1165 = vmand %vm1161, %vm1163
          %vm1166 = vmand %vm1162, %vm1164
          %1167 = vrot.lane.b32.xlu0 %v339, 123
          %v1168 = vpop.permute.xlu0 %1167
          %1169 = vrot.lane.b32.xlu0 %v335, 123
          %v1170 = vpop.permute.xlu0 %1169
          %1171 = vrot.lane.b32.xlu0 %v340, 123
          %v1172 = vpop.permute.xlu0 %1171
          %vm1173 = vcmask 1006592
          %v1174 = vsel %vm1173, %v1168, %v1170
          %v1175 = vsel %vm1173, %v1170, %v1172
          %v1178 = vsel %vm1165, %v1174, 0.0
          %v1179 = vsel %vm1166, %v1175, 0.0
          %1182 = vrot.lane.b32.xlu0 %v1178, 48
          %v1183 = vpop.permute.xlu0 %1182
          %1184 = vrot.lane.b32.xlu0 %v1179, 48
          %v1185 = vpop.permute.xlu0 %1184
          %v1186 = vsel %vm349, %v1183, %v1185
          %v1190 = vsel %vm349, 0.0, %v1183
          %v1191 = vsel %vm349, %v1185, 0.0
          %1192 = vrot.lane.b32.xlu0 %v373, 123
          %v1193 = vpop.permute.xlu0 %1192
          %1194 = vrot.lane.b32.xlu0 %v369, 123
          %v1195 = vpop.permute.xlu0 %1194
          %1196 = vrot.lane.b32.xlu0 %v374, 123
          %v1197 = vpop.permute.xlu0 %1196
          %v1198 = vsel %vm1173, %v1193, %v1195
          %v1199 = vsel %vm1173, %v1195, %v1197
          %v1202 = vsel %vm1165, %v1198, 0.0
          %v1203 = vsel %vm1166, %v1199, 0.0
          %1206 = vrot.lane.b32.xlu0 %v1202, 48
          %v1207 = vpop.permute.xlu0 %1206
          %1208 = vrot.lane.b32.xlu0 %v1203, 48
          %v1209 = vpop.permute.xlu0 %1208
          %v1210 = vsel %vm349, %v1207, %v1209
          %v1214 = vsel %vm349, 0.0, %v1207
          %v1215 = vsel %vm349, %v1209, 0.0
          %s1216 = sld [smem:[#allocation8 + $0x5]]
          %v1217 = vstv %s1216
          %v1218 = vmul.f32 %v1217, %v1190
          %v1219 = vmul.f32 %v1217, %v1186
          %v1220 = vadd.f32 %v1061, %v1218
          %v1221 = vadd.f32 %v1062, %v1219
          %s1222 = sld [smem:[#allocation8 + $0x36]]
          %v1223 = vstv %s1222
          %v1224 = vmul.f32 %v1223, %v1214
          %v1225 = vmul.f32 %v1223, %v1210
          %v1226 = vadd.f32 %v1220, %v1224
          %v1227 = vadd.f32 %v1221, %v1225
          %s1228 = sld [smem:[#allocation8 + $0xc]]
          %v1229 = vstv %s1228
          %v1230 = vmul.f32 %v1229, %v1190
          %v1231 = vmul.f32 %v1229, %v1186
          %v1232 = vmul.f32 %v1229, %v1191
          %v1233 = vadd.f32 %v1076, %v1230
          %v1234 = vadd.f32 %v1077, %v1231
          %v1235 = vadd.f32 %v1078, %v1232
          %s1236 = sld [smem:[#allocation8 + $0x3d]]
          %v1237 = vstv %s1236
          %v1238 = vmul.f32 %v1237, %v1214
          %v1239 = vmul.f32 %v1237, %v1210
          %v1240 = vmul.f32 %v1237, %v1215
          %v1241 = vadd.f32 %v1233, %v1238
          %v1242 = vadd.f32 %v1234, %v1239
          %v1243 = vadd.f32 %v1235, %v1240
          %s1244 = sld [smem:[#allocation8 + $0x13]]
          %v1245 = vstv %s1244
          %v1246 = vmul.f32 %v1245, %v1190
          %v1247 = vmul.f32 %v1245, %v1186
          %v1248 = vmul.f32 %v1245, %v1191
          %v1249 = vadd.f32 %v1092, %v1246
          %v1250 = vadd.f32 %v1093, %v1247
          %v1251 = vadd.f32 %v1094, %v1248
          %s1252 = sld [smem:[#allocation8 + $0x44]]
          %v1253 = vstv %s1252
          %v1254 = vmul.f32 %v1253, %v1214
          %v1255 = vmul.f32 %v1253, %v1210
          %v1256 = vmul.f32 %v1253, %v1215
          %v1257 = vadd.f32 %v1249, %v1254
          %v1258 = vadd.f32 %v1250, %v1255
          %v1259 = vadd.f32 %v1251, %v1256
          %s1260 = sld [smem:[#allocation8 + $0x1a]]
          %v1261 = vstv %s1260
          %v1262 = vmul.f32 %v1261, %v1190
          %v1263 = vmul.f32 %v1261, %v1186
          %v1264 = vmul.f32 %v1261, %v1191
          %v1265 = vadd.f32 %v1108, %v1262
          %v1266 = vadd.f32 %v1109, %v1263
          %v1267 = vadd.f32 %v1110, %v1264
          %s1268 = sld [smem:[#allocation8 + $0x4b]]
          %v1269 = vstv %s1268
          %v1270 = vmul.f32 %v1269, %v1214
          %v1271 = vmul.f32 %v1269, %v1210
          %v1272 = vmul.f32 %v1269, %v1215
          %v1273 = vadd.f32 %v1265, %v1270
          %v1274 = vadd.f32 %v1266, %v1271
          %v1275 = vadd.f32 %v1267, %v1272
          %s1276 = sld [smem:[#allocation8 + $0x21]]
          %v1277 = vstv %s1276
          %v1278 = vmul.f32 %v1277, %v1190
          %v1279 = vmul.f32 %v1277, %v1186
          %v1280 = vmul.f32 %v1277, %v1191
          %v1281 = vadd.f32 %v1124, %v1278
          %v1282 = vadd.f32 %v1125, %v1279
          %v1283 = vadd.f32 %v1126, %v1280
          %s1284 = sld [smem:[#allocation8 + $0x52]]
          %v1285 = vstv %s1284
          %v1286 = vmul.f32 %v1285, %v1214
          %v1287 = vmul.f32 %v1285, %v1210
          %v1288 = vmul.f32 %v1285, %v1215
          %v1289 = vadd.f32 %v1281, %v1286
          %v1290 = vadd.f32 %v1282, %v1287
          %v1291 = vadd.f32 %v1283, %v1288
          %s1292 = sld [smem:[#allocation8 + $0x28]]
          %v1293 = vstv %s1292
          %v1294 = vmul.f32 %v1293, %v1190
          %v1295 = vmul.f32 %v1293, %v1186
          %v1296 = vmul.f32 %v1293, %v1191
          %v1297 = vadd.f32 %v1140, %v1294
          %v1298 = vadd.f32 %v1141, %v1295
          %v1299 = vadd.f32 %v1142, %v1296
          %s1300 = sld [smem:[#allocation8 + $0x59]]
          %v1301 = vstv %s1300
          %v1302 = vmul.f32 %v1301, %v1214
          %v1303 = vmul.f32 %v1301, %v1210
          %v1304 = vmul.f32 %v1301, %v1215
          %v1305 = vadd.f32 %v1297, %v1302
          %v1306 = vadd.f32 %v1298, %v1303
          %v1307 = vadd.f32 %v1299, %v1304
          %s1308 = sld [smem:[#allocation8 + $0x2f]]
          %v1309 = vstv %s1308
          %v1310 = vmul.f32 %v1309, %v1190
          %v1311 = vmul.f32 %v1309, %v1186
          %v1312 = vmul.f32 %v1309, %v1191
          %v1313 = vadd.f32 %v1156, %v1310
          %v1314 = vadd.f32 %v1157, %v1311
          %v1315 = vadd.f32 %v1158, %v1312
          %s1316 = sld [smem:[#allocation8 + $0x60]]
          %v1317 = vstv %s1316
          %v1318 = vmul.f32 %v1317, %v1214
          %v1319 = vmul.f32 %v1317, %v1210
          %v1320 = vmul.f32 %v1317, %v1215
          %v1321 = vadd.f32 %v1313, %v1318
          %v1322 = vadd.f32 %v1314, %v1319
          %v1323 = vadd.f32 %v1315, %v1320
          %v1324 = vadd.s32 %v311, 3
          %v1325 = vadd.s32 %v312, 3
          %vm1326 = vcmp.ge.s32.totalorder %v1324, 0
          %vm1327 = vcmp.ge.s32.totalorder %v1325, 0
          %vm1328 = vcmp.lt.s32.totalorder %v1324, 16
          %vm1329 = vcmp.lt.s32.totalorder %v1325, 16
          %vm1330 = vmand %vm1326, %vm1328
          %vm1331 = vmand %vm1327, %vm1329
          %1332 = vrot.lane.b32.xlu0 %v339, 122
          %v1333 = vpop.permute.xlu0 %1332
          %1334 = vrot.lane.b32.xlu0 %v335, 122
          %v1335 = vpop.permute.xlu0 %1334
          %1336 = vrot.lane.b32.xlu0 %v340, 122
          %v1337 = vpop.permute.xlu0 %1336
          %vm1338 = vcmask 998400
          %v1339 = vsel %vm1338, %v1333, %v1335
          %v1340 = vsel %vm1338, %v1335, %v1337
          %v1343 = vsel %vm1330, %v1339, 0.0
          %v1344 = vsel %vm1331, %v1340, 0.0
          %1347 = vrot.lane.b32.xlu0 %v1343, 48
          %v1348 = vpop.permute.xlu0 %1347
          %1349 = vrot.lane.b32.xlu0 %v1344, 48
          %v1350 = vpop.permute.xlu0 %1349
          %v1351 = vsel %vm349, %v1348, %v1350
          %v1355 = vsel %vm349, 0.0, %v1348
          %v1356 = vsel %vm349, %v1350, 0.0
          %1357 = vrot.lane.b32.xlu0 %v373, 122
          %v1358 = vpop.permute.xlu0 %1357
          %1359 = vrot.lane.b32.xlu0 %v369, 122
          %v1360 = vpop.permute.xlu0 %1359
          %1361 = vrot.lane.b32.xlu0 %v374, 122
          %v1362 = vpop.permute.xlu0 %1361
          %v1363 = vsel %vm1338, %v1358, %v1360
          %v1364 = vsel %vm1338, %v1360, %v1362
          %v1367 = vsel %vm1330, %v1363, 0.0
          %v1368 = vsel %vm1331, %v1364, 0.0
          %1371 = vrot.lane.b32.xlu0 %v1367, 48
          %v1372 = vpop.permute.xlu0 %1371
          %1373 = vrot.lane.b32.xlu0 %v1368, 48
          %v1374 = vpop.permute.xlu0 %1373
          %v1375 = vsel %vm349, %v1372, %v1374
          %v1379 = vsel %vm349, 0.0, %v1372
          %v1380 = vsel %vm349, %v1374, 0.0
          %s1381 = sld [smem:[#allocation8 + $0x6]]
          %v1382 = vstv %s1381
          %v1383 = vmul.f32 %v1382, %v1355
          %v1384 = vmul.f32 %v1382, %v1351
          %v1385 = vadd.f32 %v1226, %v1383
          %v1386 = vadd.f32 %v1227, %v1384
          %s1387 = sld [smem:[#allocation8 + $0x37]]
          %v1388 = vstv %s1387
          %v1389 = vmul.f32 %v1388, %v1379
          %v1390 = vmul.f32 %v1388, %v1375
          %v1391 = vadd.f32 %v1385, %v1389
          %v1392 = vadd.f32 %v1386, %v1390
          %s1393 = sld [smem:[#allocation8 + $0xd]]
          %v1394 = vstv %s1393
          %v1395 = vmul.f32 %v1394, %v1355
          %v1396 = vmul.f32 %v1394, %v1351
          %v1397 = vmul.f32 %v1394, %v1356
          %v1398 = vadd.f32 %v1241, %v1395
          %v1399 = vadd.f32 %v1242, %v1396
          %v1400 = vadd.f32 %v1243, %v1397
          %s1401 = sld [smem:[#allocation8 + $0x3e]]
          %v1402 = vstv %s1401
          %v1403 = vmul.f32 %v1402, %v1379
          %v1404 = vmul.f32 %v1402, %v1375
          %v1405 = vmul.f32 %v1402, %v1380
          %v1406 = vadd.f32 %v1398, %v1403
          %v1407 = vadd.f32 %v1399, %v1404
          %v1408 = vadd.f32 %v1400, %v1405
          %s1409 = sld [smem:[#allocation8 + $0x14]]
          %v1410 = vstv %s1409
          %v1411 = vmul.f32 %v1410, %v1355
          %v1412 = vmul.f32 %v1410, %v1351
          %v1413 = vmul.f32 %v1410, %v1356
          %v1414 = vadd.f32 %v1257, %v1411
          %v1415 = vadd.f32 %v1258, %v1412
          %v1416 = vadd.f32 %v1259, %v1413
          %s1417 = sld [smem:[#allocation8 + $0x45]]
          %v1418 = vstv %s1417
          %v1419 = vmul.f32 %v1418, %v1379
          %v1420 = vmul.f32 %v1418, %v1375
          %v1421 = vmul.f32 %v1418, %v1380
          %v1422 = vadd.f32 %v1414, %v1419
          %v1423 = vadd.f32 %v1415, %v1420
          %v1424 = vadd.f32 %v1416, %v1421
          %s1425 = sld [smem:[#allocation8 + $0x1b]]
          %v1426 = vstv %s1425
          %v1427 = vmul.f32 %v1426, %v1355
          %v1428 = vmul.f32 %v1426, %v1351
          %v1429 = vmul.f32 %v1426, %v1356
          %v1430 = vadd.f32 %v1273, %v1427
          %v1431 = vadd.f32 %v1274, %v1428
          %v1432 = vadd.f32 %v1275, %v1429
          %s1433 = sld [smem:[#allocation8 + $0x4c]]
          %v1434 = vstv %s1433
          %v1435 = vmul.f32 %v1434, %v1379
          %v1436 = vmul.f32 %v1434, %v1375
          %v1437 = vmul.f32 %v1434, %v1380
          %v1438 = vadd.f32 %v1430, %v1435
          %v1439 = vadd.f32 %v1431, %v1436
          %v1440 = vadd.f32 %v1432, %v1437
          %s1441 = sld [smem:[#allocation8 + $0x22]]
          %v1442 = vstv %s1441
          %v1443 = vmul.f32 %v1442, %v1355
          %v1444 = vmul.f32 %v1442, %v1351
          %v1445 = vmul.f32 %v1442, %v1356
          %v1446 = vadd.f32 %v1289, %v1443
          %v1447 = vadd.f32 %v1290, %v1444
          %v1448 = vadd.f32 %v1291, %v1445
          %s1449 = sld [smem:[#allocation8 + $0x53]]
          %v1450 = vstv %s1449
          %v1451 = vmul.f32 %v1450, %v1379
          %v1452 = vmul.f32 %v1450, %v1375
          %v1453 = vmul.f32 %v1450, %v1380
          %v1454 = vadd.f32 %v1446, %v1451
          %v1455 = vadd.f32 %v1447, %v1452
          %v1456 = vadd.f32 %v1448, %v1453
          %s1457 = sld [smem:[#allocation8 + $0x29]]
          %v1458 = vstv %s1457
          %v1459 = vmul.f32 %v1458, %v1355
          %v1460 = vmul.f32 %v1458, %v1351
          %v1461 = vmul.f32 %v1458, %v1356
          %v1462 = vadd.f32 %v1305, %v1459
          %v1463 = vadd.f32 %v1306, %v1460
          %v1464 = vadd.f32 %v1307, %v1461
          %s1465 = sld [smem:[#allocation8 + $0x5a]]
          %v1466 = vstv %s1465
          %v1467 = vmul.f32 %v1466, %v1379
          %v1468 = vmul.f32 %v1466, %v1375
          %v1469 = vmul.f32 %v1466, %v1380
          %v1470 = vadd.f32 %v1462, %v1467
          %v1471 = vadd.f32 %v1463, %v1468
          %v1472 = vadd.f32 %v1464, %v1469
          %s1473 = sld [smem:[#allocation8 + $0x30]]
          %v1474 = vstv %s1473
          %v1475 = vmul.f32 %v1474, %v1355
          %v1476 = vmul.f32 %v1474, %v1351
          %v1477 = vmul.f32 %v1474, %v1356
          %v1478 = vadd.f32 %v1321, %v1475
          %v1479 = vadd.f32 %v1322, %v1476
          %v1480 = vadd.f32 %v1323, %v1477
          %s1481 = sld [smem:[#allocation8 + $0x61]]
          %v1482 = vstv %s1481
          %v1483 = vmul.f32 %v1482, %v1379
          %v1484 = vmul.f32 %v1482, %v1375
          %v1485 = vmul.f32 %v1482, %v1380
          %v1486 = vadd.f32 %v1478, %v1483
          %v1487 = vadd.f32 %v1479, %v1484
          %v1488 = vadd.f32 %v1480, %v1485
          %1492 = vrot.lane.b32.xlu0 %v1406, 112
          %v1493 = vpop.permute.xlu0 %1492
          %1494 = vrot.lane.b32.xlu0 %v1407, 112
          %v1495 = vpop.permute.xlu0 %1494
          %1496 = vrot.lane.b32.xlu0 %v1408, 112
          %v1497 = vpop.permute.xlu0 %1496
          %vm1498 = vcmask 916480
          %v1499 = vsel %vm1498, %v1493, %v1495
          %v1500 = vsel %vm1498, %v1495, %v1497
          %v1503 = vadd.f32 %v1391, %v1499
          %v1504 = vadd.f32 %v1392, %v1500
          %1508 = vrot.lane.b32.xlu0 %v1438, 112
          %v1509 = vpop.permute.xlu0 %1508
          %1510 = vrot.lane.b32.xlu0 %v1439, 112
          %v1511 = vpop.permute.xlu0 %1510
          %1512 = vrot.lane.b32.xlu0 %v1440, 112
          %v1513 = vpop.permute.xlu0 %1512
          %v1514 = vsel %vm1498, %v1509, %v1511
          %v1515 = vsel %vm1498, %v1511, %v1513
          %v1519 = vadd.f32 %v1422, %v1514
          %v1520 = vadd.f32 %v1423, %v1515
          %v1521 = vadd.f32 %v1424, %v1513
          %1525 = vrot.lane.b32.xlu0 %v1470, 112
          %v1526 = vpop.permute.xlu0 %1525
          %1527 = vrot.lane.b32.xlu0 %v1471, 112
          %v1528 = vpop.permute.xlu0 %1527
          %1529 = vrot.lane.b32.xlu0 %v1472, 112
          %v1530 = vpop.permute.xlu0 %1529
          %v1531 = vsel %vm1498, %v1526, %v1528
          %v1532 = vsel %vm1498, %v1528, %v1530
          %v1536 = vadd.f32 %v1454, %v1531
          %v1537 = vadd.f32 %v1455, %v1532
          %v1538 = vadd.f32 %v1456, %v1530
          %1542 = vrot.lane.b32.xlu0 %v1519, 96
          %v1543 = vpop.permute.xlu0 %1542
          %1544 = vrot.lane.b32.xlu0 %v1520, 96
          %v1545 = vpop.permute.xlu0 %1544
          %1546 = vrot.lane.b32.xlu0 %v1521, 96
          %v1547 = vpop.permute.xlu0 %1546
          %vm1548 = vcmask 785408
          %v1549 = vsel %vm1548, %v1543, %v1545
          %v1550 = vsel %vm1548, %v1545, %v1547
          %v1553 = vadd.f32 %v1503, %v1549
          %v1554 = vadd.f32 %v1504, %v1550
          %1558 = vrot.lane.b32.xlu0 %v1486, 96
          %v1559 = vpop.permute.xlu0 %1558
          %1560 = vrot.lane.b32.xlu0 %v1487, 96
          %v1561 = vpop.permute.xlu0 %1560
          %1562 = vrot.lane.b32.xlu0 %v1488, 96
          %v1563 = vpop.permute.xlu0 %1562
          %v1564 = vsel %vm1548, %v1559, %v1561
          %v1565 = vsel %vm1548, %v1561, %v1563
          %v1569 = vadd.f32 %v1536, %v1564
          %v1570 = vadd.f32 %v1537, %v1565
          %v1571 = vadd.f32 %v1538, %v1563
          %1575 = vrot.lane.b32.xlu0 %v1569, 64
          %v1576 = vpop.permute.xlu0 %1575
          %1577 = vrot.lane.b32.xlu0 %v1570, 64
          %v1578 = vpop.permute.xlu0 %1577
          %1579 = vrot.lane.b32.xlu0 %v1571, 64
          %v1580 = vpop.permute.xlu0 %1579
          %vm1581 = vcmask 523264
          %v1582 = vsel %vm1581, %v1576, %v1578
          %v1583 = vsel %vm1581, %v1578, %v1580
          %v1586 = vadd.f32 %v1553, %v1582
          %v1587 = vadd.f32 %v1554, %v1583
          %v1588 = vxor.u32 %v1586, 2147483648
          %v1589 = vxor.u32 %v1587, 2147483648
          %v1590 = vmul.f32 %v1588, 1.442695
          %v1591 = vpow.pop %v1590
          %v1592 = vmul.f32 %v1589, 1.442695
          %v1593 = vpow.pop %v1592
          %v1594 = vadd.f32 %v1591, 1.0
          %v1595 = vadd.f32 %v1593, 1.0
          %v1596 = vrcp.pop %v1594
          %v1597 = vmul.f32 1.0, %v1596
          %v1598 = vrcp.pop %v1595
          %v1599 = vmul.f32 1.0, %v1598
          %v1600 = vld [vmem:[%s189] sm:$0xff]
          %v1601 = vlaneseq
          %v1602 = vshrl.u32 %v1601, 7
          %v1603 = vsub.s32 0, %v1602
          %v1604 = vrot.slane %v1597, %v1603
          %v1605 = vlaneseq
          %v1606 = vshrl.u32 %v1605, 7
          %v1607 = vsub.s32 0, %v1606
          %v1608 = vrot.slane %v1599, %v1607
          %v1611 = vcombine.low %v1604, %v1608
          %v1613 = vmul.f32 %v1600, %v1611
          %1614 = vst [vmem:[%s189] sm:$0xff] %v1613
        $region44: #{tpu_custom_call.1} parent=27 // pred_fallthru
          _
        %s1615 = sand.u32 %s89, 1
        %s1616 = scalar_lea.sflag [#allocation6], %s1615
        %s1617 = sand.u32 %s89, 1
        %s1618 = smul.addr %s1617, 8
        %s1619 = scalar_lea.vmem [#allocation9], %s1618
        // Predicated region
        $region45: #{tpu_custom_call.1} parent=27 // pred_check
          %p1620 = pneg %p99
        $region46: #{tpu_custom_call.1} parent=27 // pred_check_branch
          %1622 = sbr.rel (%p1620) target = $region48
        $region47: #{tpu_custom_call.1} parent=27 // pred_region
          %s1624 = ssub.s32 128, 128
          %1625 = vsyncadd %s1616, %s1624
          %s1626 = smul.addr %s24, 2
          %s1627 = smul.addr %s1626, 64
          %s1628 = scalar_lea.hbm %s2, %s1627
          %s1630 = sshll.u32 %s1619, 4
          %s1631 = int_to_ptr.vmem [resolvable:$true] %s1630
          %1633 = dma.vmem_to_hbm [thread:$0]  %s1631, 128, %s1628, %s1616
        $region48: #{tpu_custom_call.1} parent=27 // pred_fallthru
          _
      $region28: #{tpu_custom_call.1} parent=5 // pred_fallthru
        _
      %p1634 = scmp.le.s32.totalorder 2, %s15
      // Predicated region
      $region49: #{tpu_custom_call.1} parent=5 // pred_check
        %p1635 = pneg %p1634
      $region50: #{tpu_custom_call.1} parent=5 // pred_check_branch
        %1637 = sbr.rel (%p1635) target = $region52
      $region51: #{tpu_custom_call.1} parent=5 // pred_region
        %s1638 = ssub.s32 %s15, 2
        // Predicated region
        $region53: #{tpu_custom_call.1} parent=51 // pred_check
          %p1639 = pneg %p105
        $region54: #{tpu_custom_call.1} parent=51 // pred_check_branch
          %1641 = sbr.rel (%p1639) target = $region56
        $region55: #{tpu_custom_call.1} parent=51 // pred_region
          %s1642 = sand.u32 %s90, 1
          %s1643 = scalar_lea.sflag [#allocation6], %s1642
          %s1644 = sand.u32 %s90, 1
          %s1645 = smul.addr %s1644, 8
          %s1646 = scalar_lea.vmem [#allocation9], %s1645
          %1647 = dma.done %s1643, 128
        $region56: #{tpu_custom_call.1} parent=51 // pred_fallthru
          _
      $region52: #{tpu_custom_call.1} parent=5 // pred_fallthru
        _
    $region6: #{tpu_custom_call.1} parent=1 // loop_footer
      %s19 = sadd.s32 1, %s15
    $region7: #{tpu_custom_call.1} parent=1 // loop_footer_branch
      %14 = sbr.rel target = $region3
    $region8: #{tpu_custom_call.1} parent=1 // loop_exit
      _
    %1648 = vsyncpa [#allocation5], 1
    %s1649 = scalar_lea.sflag [#allocation5], 1
    %1650 = vsyncpa %s1649, 1
    %1651 = vsyncpa [#allocation6], 1
    %s1652 = scalar_lea.sflag [#allocation6], 1
    %1653 = vsyncpa %s1652, 1
    %1654 = vsyncpa [#allocation7], 1
    %s1655 = scalar_lea.sflag [#allocation7], 1
    %1656 = vsyncpa %s1655, 1

</llo_original>
